<compile_context>
chip_gen: v5e
topology: v5e:2x2
jax: 0.10.0
libtpu: 0.0.40
codegen_flags: <defaults>
</compile_context>

<pallas_src>
import functools

import jax
import jax.numpy as jnp
from jax import lax
from jax.experimental import pallas as pl
from jax.experimental.pallas import tpu as pltpu


def _round_up(x, m):
    return ((x + m - 1) // m) * m


def _sru_chunk_kernel(x_ref, w_ref, b_ref, h_ref,
                      ct_scr, f_scr, u_scr, r_scr, v_scr):
    """One grid step = one chunk of T timesteps (time-major rows, batch padded
    to a multiple of 8 sublanes).

      x_ref : (T*Bp, feat)   input chunk
      w_ref : (feat, 4*H)    fused gate weights [x_t | f | r | convert_x]
      b_ref : (1, 4*H)       fused gate biases  [ 0  | bf| br| bc       ]
      h_ref : (T, Bp, H)     output chunk
      ct_scr: (Bp, H)        recurrent cell state, resident across the grid
      f/u/r/v_scr: (T*Bp, H) chunk-wide precomputed gate tensors
    """
    t = pl.program_id(0)

    @pl.when(t == 0)
    def _init():
        # c_{-1} = 0  (Song2Hum.init_hidden).
        ct_scr[...] = jnp.zeros_like(ct_scr)

    bp, n_out = ct_scr.shape
    t_chunk = h_ref.shape[0]

    # ---- hoisted, chunk-wide work (MXU + full-lane VPU/EUP) ----------------
    # One fused matmul computes all four gate pre-activations for the chunk.
    gates = (jnp.dot(x_ref[...], w_ref[...],
                     preferred_element_type=jnp.float32)
             + b_ref[...])                                  # (T*Bp, 4*H)

    x_t = gates[:, 0 * n_out:1 * n_out]                     # x_t (no bias)
    f_t = jax.nn.sigmoid(gates[:, 1 * n_out:2 * n_out])     # forget gate
    r_t = jax.nn.sigmoid(gates[:, 2 * n_out:3 * n_out])     # reset gate
    c_x = gates[:, 3 * n_out:4 * n_out]                     # convert_x(x)

    f_scr[...] = f_t
    u_scr[...] = (1.0 - f_t) * x_t
    r_scr[...] = r_t
    v_scr[...] = (1.0 - r_t) * c_x

    # ---- the only truly sequential part:  c = f*c + u ; h = r*tanh(c) + v --
    def step(i, ct):
        row = pl.multiple_of(i * bp, bp)       # bp % 8 == 0 -> aligned slices
        sl = pl.ds(row, bp)
        ct_new = f_scr[sl, :] * ct + u_scr[sl, :]
        h_ref[i] = (r_scr[sl, :] * jnp.tanh(ct_new)
                    + v_scr[sl, :]).astype(h_ref.dtype)
        return ct_new

    ct_scr[...] = lax.fori_loop(0, t_chunk, step, ct_scr[...],
                                unroll=min(t_chunk, 8))


def _sru_layer(x2d, w_eff, b_eff, *, s_pad, bp, t_chunk):
    """One SRU layer over x2d: (s_pad*bp, feat) time-major row blocks."""
    feat = x2d.shape[1]
    n_out = w_eff.shape[1] // 4
    n_chunks = s_pad // t_chunk

    return pl.pallas_call(
        _sru_chunk_kernel,
        grid=(n_chunks,),
        in_specs=[
            pl.BlockSpec((t_chunk * bp, feat), lambda t: (t, 0)),
            pl.BlockSpec(w_eff.shape, lambda t: (0, 0)),   # resident weights
            pl.BlockSpec(b_eff.shape, lambda t: (0, 0)),   # resident bias
        ],
        out_specs=pl.BlockSpec((t_chunk, bp, n_out), lambda t: (t, 0, 0)),
        out_shape=jax.ShapeDtypeStruct((s_pad, bp, n_out), jnp.float32),
        scratch_shapes=[
            pltpu.VMEM((bp, n_out), jnp.float32),             # ct carry
            pltpu.VMEM((t_chunk * bp, n_out), jnp.float32),   # f
            pltpu.VMEM((t_chunk * bp, n_out), jnp.float32),   # (1-f)*x_t
            pltpu.VMEM((t_chunk * bp, n_out), jnp.float32),   # r
            pltpu.VMEM((t_chunk * bp, n_out), jnp.float32),   # (1-r)*con
        ],
        compiler_params=pltpu.CompilerParams(
            dimension_semantics=("arbitrary",)),   # sequential carry over time
    )(x2d, w_eff, b_eff)


@functools.partial(jax.jit, static_argnames=("num_layers", "use_bf16_matmul"))
def song2hum_forward(x, params, num_layers, use_bf16_matmul=False):
    """x: (batch, seq, input_dim) -> (batch, seq, hidden_dim)."""
    assert num_layers >= 1
    B, S, D = x.shape
    n_in, n_out = params["wx"].shape

    # Fuse the 4 gate projections into a single (feat, 4*n_out) matmul.
    wg = jnp.concatenate([params["wx"], params["wf"],
                          params["wr"], params["wc"]], axis=1)
    bg = jnp.concatenate([jnp.zeros((1, n_out), jnp.float32),
                          params["bf"], params["br"], params["bc"]], axis=1)
    # convert_x_layer folded into the gate weights (used when feat == n_out).
    wg_p = jnp.dot(params["wcl"], wg, preferred_element_type=jnp.float32)
    bg_p = jnp.dot(params["bcl"], wg, preferred_element_type=jnp.float32) + bg

    # Time-major layout; pad batch to 8-sublane multiple, seq to whole chunks.
    bp = _round_up(B, 8)
    t_chunk = max(1, min(S, 256 // bp))
    s_pad = _round_up(S, t_chunk)

    xt = jnp.transpose(x, (1, 0, 2)).astype(jnp.float32)       # (S, B, D)
    xt = jnp.pad(xt, ((0, s_pad - S), (0, bp - B), (0, 0)))
    h2d = xt.reshape(s_pad * bp, D)

    mm_dtype = jnp.bfloat16 if use_bf16_matmul else jnp.float32

    h3d = None
    for _ in range(num_layers):
        feat = h2d.shape[-1]
        if feat == n_out:            # torch: convert_x_layer applied first
            w_eff, b_eff = wg_p, bg_p
        else:
            w_eff, b_eff = wg, bg
        h3d = _sru_layer(h2d.astype(mm_dtype), w_eff.astype(mm_dtype), b_eff,
                         s_pad=s_pad, bp=bp, t_chunk=t_chunk)
        h2d = h3d.reshape(s_pad * bp, n_out)

    out = h3d[:S, :B, :]                                       # (S, B, H)
    # TODO(synk): nn.Dropout(0.2) is identity in eval mode; not applied.
    return jnp.transpose(out, (1, 0, 2))                       # (B, S, H)


def song2hum_reference(x, params, num_layers):
    """Pure-JAX reference mirroring the PyTorch forward (eval mode)."""
    n_in, n_out = params["wx"].shape
    xt = jnp.transpose(x, (1, 0, 2)).astype(jnp.float32)
    for _ in range(num_layers):
        if xt.shape[-1] == n_out:
            xt = xt @ params["wcl"] + params["bcl"]
        ct = jnp.zeros((xt.shape[1], n_out), jnp.float32)
        hs = []
        for i in range(xt.shape[0]):
            xi = xt[i]
            x_t = xi @ params["wx"]
            f_t = jax.nn.sigmoid(xi @ params["wf"] + params["bf"])
            r_t = jax.nn.sigmoid(xi @ params["wr"] + params["br"])
            ct = f_t * ct + (1.0 - f_t) * x_t
            con = xi @ params["wc"] + params["bc"]
            hs.append(r_t * jnp.tanh(ct) + (1.0 - r_t) * con)
        xt = jnp.stack(hs, axis=0)
    return jnp.transpose(xt, (1, 0, 2))


def init_params(key, n_in, n_out):
    """Deterministic torch.nn.Linear-style init (U[-1/sqrt(fan_in), +])."""
    def linear(k, fan_in, fan_out, bias):
        kw, kb = jax.random.split(k)
        bound = 1.0 / jnp.sqrt(jnp.float32(fan_in))
        w = jax.random.uniform(kw, (fan_in, fan_out), jnp.float32,
                               -bound, bound)
        if bias:
            b = jax.random.uniform(kb, (1, fan_out), jnp.float32,
                                   -bound, bound)
            return w, b
        return w, None

    ks = jax.random.split(key, 5)
    wx, _ = linear(ks[0], n_in, n_out, bias=False)       # x_t (no bias)
    wf, bf = linear(ks[1], n_in, n_out, bias=True)       # ft
    wr, br = linear(ks[2], n_in, n_out, bias=True)       # rt
    wc, bc = linear(ks[3], n_in, n_out, bias=True)       # convert_x
    wcl, bcl = linear(ks[4], n_out, n_in, bias=True)     # convert_x_layer
    return {"wx": wx, "wf": wf, "bf": bf, "wr": wr, "br": br,
            "wc": wc, "bc": bc, "wcl": wcl, "bcl": bcl}


if __name__ == "__main__":
    batch, seq = 2, 8
    input_dim, hidden_dim = 16, 32
    num_layers = 2

    key = jax.random.PRNGKey(0)
    k_x, k_p = jax.random.split(key)
    x = jax.random.normal(k_x, (batch, seq, input_dim), jnp.float32)
    params = init_params(k_p, input_dim, hidden_dim)

    out = song2hum_forward(x, params, num_layers)
    out = jax.block_until_ready(out)
    assert out.shape == (batch, seq, hidden_dim)

    # Tolerance covers MXU f32-matmul rounding and the (exactly algebraic, but
    # re-associated) convert_x_layer fold.
    ref = song2hum_reference(x, params, num_layers)
    max_err = float(jnp.max(jnp.abs(out - ref)))
    assert jnp.allclose(out, ref, atol=2e-2, rtol=2e-2), max_err

    print("KERNEL_OK")
</pallas_src>

<mosaic_0001>
module attributes {stable_mosaic.version = 11 : i64} {
  func.func @_sru_chunk_kernel(%arg0: i32, %arg1: memref<64x16xf32, #tpu.memory_space<vmem>>, %arg2: memref<16x128xf32, #tpu.memory_space<vmem>>, %arg3: memref<1x128xf32, #tpu.memory_space<vmem>>, %arg4: memref<8x8x32xf32, #tpu.memory_space<vmem>>, %arg5: memref<8x32xf32, #tpu.memory_space<vmem>>, %arg6: memref<64x32xf32, #tpu.memory_space<vmem>>, %arg7: memref<64x32xf32, #tpu.memory_space<vmem>>, %arg8: memref<64x32xf32, #tpu.memory_space<vmem>>, %arg9: memref<64x32xf32, #tpu.memory_space<vmem>>) attributes {dimension_semantics = [#tpu.dimension_semantics<arbitrary>], iteration_bounds = array<i64: 1>, scalar_prefetch = 0 : i64, scratch_operands = 5 : i64, tpu.core_type = #tpu.core_type<tc>, window_params = [{transform_indices = @transform_0, window_bounds = array<i64: 64, 16>}, {pipeline_mode = #tpu.pipeline_mode<synchronous>, transform_indices = @transform_1, window_bounds = array<i64: 16, 128>}, {pipeline_mode = #tpu.pipeline_mode<synchronous>, transform_indices = @transform_2, window_bounds = array<i64: 1, 128>}, {transform_indices = @transform_3, window_bounds = array<i64: 8, 8, 32>}]} {
    %c0_i32 = arith.constant 0 : i32
    %0 = arith.cmpi eq, %arg0, %c0_i32 : i32
    %1 = arith.extui %0 : i1 to i32
    %c0_i32_0 = arith.constant 0 : i32
    %2 = arith.cmpi ne, %1, %c0_i32_0 : i32
    scf.if %2 {
      %cst_79 = arith.constant 0.000000e+00 : f32
      %187 = vector.broadcast %cst_79 : f32 to vector<8x32xf32>
      %c0_80 = arith.constant 0 : index
      %c0_81 = arith.constant 0 : index
      %188 = vector.load %arg5[%c0_80, %c0_81] : memref<8x32xf32, #tpu.memory_space<vmem>>, vector<8x32xf32>
      tpu.vector_store %arg5[%c0_80, %c0_81], %187 {strides = array<i32>} : memref<8x32xf32, #tpu.memory_space<vmem>>, vector<8x32xf32>,
    } else {
    }
    %c0 = arith.constant 0 : index
    %c0_1 = arith.constant 0 : index
    %3 = vector.load %arg1[%c0, %c0_1] : memref<64x16xf32, #tpu.memory_space<vmem>>, vector<64x16xf32>
    %c0_2 = arith.constant 0 : index
    %c0_3 = arith.constant 0 : index
    %4 = vector.load %arg2[%c0_2, %c0_3] : memref<16x128xf32, #tpu.memory_space<vmem>>, vector<16x128xf32>
    %cst = arith.constant dense<0.000000e+00> : vector<64x128xf32>
    %5 = tpu.matmul %3, %4, %cst {dimension_numbers = #tpu.dot_dimension_numbers<[1], [0], [0], [1], [0, 0, 1, 1], [], []>} : vector<64x16xf32>, vector<16x128xf32>, vector<64x128xf32> -> vector<64x128xf32>
    %c0_4 = arith.constant 0 : index
    %c0_5 = arith.constant 0 : index
    %6 = vector.load %arg3[%c0_4, %c0_5] : memref<1x128xf32, #tpu.memory_space<vmem>>, vector<1x128xf32>
    %7 = vector.broadcast %6 : vector<1x128xf32> to vector<64x128xf32>
    %8 = arith.addf %5, %7 : vector<64x128xf32>
    %9 = vector.extract_strided_slice %8 {offsets = [0, 0], sizes = [64, 32], strides = [1, 1]} : vector<64x128xf32> to vector<64x32xf32>
    %10 = vector.extract_strided_slice %8 {offsets = [0, 32], sizes = [64, 32], strides = [1, 1]} : vector<64x128xf32> to vector<64x32xf32>
    %11 = arith.negf %10 : vector<64x32xf32>
    %12 = math.exp %11 : vector<64x32xf32>
    %cst_6 = arith.constant 1.000000e+00 : f32
    %13 = vector.broadcast %cst_6 : f32 to vector<64x32xf32>
    %14 = arith.addf %13, %12 : vector<64x32xf32>
    %15 = arith.divf %13, %14 : vector<64x32xf32>
    %16 = vector.extract_strided_slice %8 {offsets = [0, 64], sizes = [64, 32], strides = [1, 1]} : vector<64x128xf32> to vector<64x32xf32>
    %17 = arith.negf %16 : vector<64x32xf32>
    %18 = math.exp %17 : vector<64x32xf32>
    %cst_7 = arith.constant 1.000000e+00 : f32
    %19 = vector.broadcast %cst_7 : f32 to vector<64x32xf32>
    %20 = arith.addf %19, %18 : vector<64x32xf32>
    %21 = arith.divf %19, %20 : vector<64x32xf32>
    %22 = vector.extract_strided_slice %8 {offsets = [0, 96], sizes = [64, 32], strides = [1, 1]} : vector<64x128xf32> to vector<64x32xf32>
    %c0_8 = arith.constant 0 : index
    %c0_9 = arith.constant 0 : index
    %23 = vector.load %arg6[%c0_8, %c0_9] : memref<64x32xf32, #tpu.memory_space<vmem>>, vector<64x32xf32>
    tpu.vector_store %arg6[%c0_8, %c0_9], %15 {strides = array<i32>} : memref<64x32xf32, #tpu.memory_space<vmem>>, vector<64x32xf32>,
    %cst_10 = arith.constant 1.000000e+00 : f32
    %24 = vector.broadcast %cst_10 : f32 to vector<64x32xf32>
    %25 = arith.subf %24, %15 : vector<64x32xf32>
    %26 = arith.mulf %25, %9 : vector<64x32xf32>
    %c0_11 = arith.constant 0 : index
    %c0_12 = arith.constant 0 : index
    %27 = vector.load %arg7[%c0_11, %c0_12] : memref<64x32xf32, #tpu.memory_space<vmem>>, vector<64x32xf32>
    tpu.vector_store %arg7[%c0_11, %c0_12], %26 {strides = array<i32>} : memref<64x32xf32, #tpu.memory_space<vmem>>, vector<64x32xf32>,
    %c0_13 = arith.constant 0 : index
    %c0_14 = arith.constant 0 : index
    %28 = vector.load %arg8[%c0_13, %c0_14] : memref<64x32xf32, #tpu.memory_space<vmem>>, vector<64x32xf32>
    tpu.vector_store %arg8[%c0_13, %c0_14], %21 {strides = array<i32>} : memref<64x32xf32, #tpu.memory_space<vmem>>, vector<64x32xf32>,
    %cst_15 = arith.constant 1.000000e+00 : f32
    %29 = vector.broadcast %cst_15 : f32 to vector<64x32xf32>
    %30 = arith.subf %29, %21 : vector<64x32xf32>
    %31 = arith.mulf %30, %22 : vector<64x32xf32>
    %c0_16 = arith.constant 0 : index
    %c0_17 = arith.constant 0 : index
    %32 = vector.load %arg9[%c0_16, %c0_17] : memref<64x32xf32, #tpu.memory_space<vmem>>, vector<64x32xf32>
    tpu.vector_store %arg9[%c0_16, %c0_17], %31 {strides = array<i32>} : memref<64x32xf32, #tpu.memory_space<vmem>>, vector<64x32xf32>,
    %c0_18 = arith.constant 0 : index
    %c0_19 = arith.constant 0 : index
    %33 = vector.load %arg5[%c0_18, %c0_19] : memref<8x32xf32, #tpu.memory_space<vmem>>, vector<8x32xf32>
    %c0_i32_20 = arith.constant 0 : i32
    %c8_i32 = arith.constant 8 : i32
    %34 = arith.muli %c0_i32_20, %c8_i32 : i32
    %35 = tpu.assume_multiple %34, 8 : i32
    %36 = arith.index_cast %35 : i32 to index
    %c0_21 = arith.constant 0 : index
    %37 = vector.load %arg6[%36, %c0_21] : memref<64x32xf32, #tpu.memory_space<vmem>>, vector<8x32xf32>
    %38 = arith.mulf %37, %33 : vector<8x32xf32>
    %39 = arith.index_cast %35 : i32 to index
    %c0_22 = arith.constant 0 : index
    %40 = vector.load %arg7[%39, %c0_22] : memref<64x32xf32, #tpu.memory_space<vmem>>, vector<8x32xf32>
    %41 = arith.addf %38, %40 : vector<8x32xf32>
    %42 = arith.index_cast %35 : i32 to index
    %c0_23 = arith.constant 0 : index
    %43 = vector.load %arg8[%42, %c0_23] : memref<64x32xf32, #tpu.memory_space<vmem>>, vector<8x32xf32>
    %44 = math.tanh %41 : vector<8x32xf32>
    %45 = arith.mulf %43, %44 : vector<8x32xf32>
    %46 = arith.index_cast %35 : i32 to index
    %c0_24 = arith.constant 0 : index
    %47 = vector.load %arg9[%46, %c0_24] : memref<64x32xf32, #tpu.memory_space<vmem>>, vector<8x32xf32>
    %48 = arith.addf %45, %47 : vector<8x32xf32>
    %49 = arith.index_cast %c0_i32_20 : i32 to index
    %c0_25 = arith.constant 0 : index
    %c0_26 = arith.constant 0 : index
    %50 = vector.load %arg4[%49, %c0_25, %c0_26] : memref<8x8x32xf32, #tpu.memory_space<vmem>>, vector<1x8x32xf32>
    %51 = vector.shape_cast %50 : vector<1x8x32xf32> to vector<8x32xf32>
    %52 = vector.shape_cast %48 : vector<8x32xf32> to vector<1x8x32xf32>
    tpu.vector_store %arg4[%49, %c0_25, %c0_26], %52 {strides = array<i32>} : memref<8x8x32xf32, #tpu.memory_space<vmem>>, vector<1x8x32xf32>,
    %c1_i32 = arith.constant 1 : i32
    %c8_i32_27 = arith.constant 8 : i32
    %53 = arith.muli %c1_i32, %c8_i32_27 : i32
    %54 = tpu.assume_multiple %53, 8 : i32
    %55 = arith.index_cast %54 : i32 to index
    %c0_28 = arith.constant 0 : index
    %56 = vector.load %arg6[%55, %c0_28] : memref<64x32xf32, #tpu.memory_space<vmem>>, vector<8x32xf32>
    %57 = arith.mulf %56, %41 : vector<8x32xf32>
    %58 = arith.index_cast %54 : i32 to index
    %c0_29 = arith.constant 0 : index
    %59 = vector.load %arg7[%58, %c0_29] : memref<64x32xf32, #tpu.memory_space<vmem>>, vector<8x32xf32>
    %60 = arith.addf %57, %59 : vector<8x32xf32>
    %61 = arith.index_cast %54 : i32 to index
    %c0_30 = arith.constant 0 : index
    %62 = vector.load %arg8[%61, %c0_30] : memref<64x32xf32, #tpu.memory_space<vmem>>, vector<8x32xf32>
    %63 = math.tanh %60 : vector<8x32xf32>
    %64 = arith.mulf %62, %63 : vector<8x32xf32>
    %65 = arith.index_cast %54 : i32 to index
    %c0_31 = arith.constant 0 : index
    %66 = vector.load %arg9[%65, %c0_31] : memref<64x32xf32, #tpu.memory_space<vmem>>, vector<8x32xf32>
    %67 = arith.addf %64, %66 : vector<8x32xf32>
    %68 = arith.index_cast %c1_i32 : i32 to index
    %c0_32 = arith.constant 0 : index
    %c0_33 = arith.constant 0 : index
    %69 = vector.load %arg4[%68, %c0_32, %c0_33] : memref<8x8x32xf32, #tpu.memory_space<vmem>>, vector<1x8x32xf32>
    %70 = vector.shape_cast %69 : vector<1x8x32xf32> to vector<8x32xf32>
    %71 = vector.shape_cast %67 : vector<8x32xf32> to vector<1x8x32xf32>
    tpu.vector_store %arg4[%68, %c0_32, %c0_33], %71 {strides = array<i32>} : memref<8x8x32xf32, #tpu.memory_space<vmem>>, vector<1x8x32xf32>,
    %c2_i32 = arith.constant 2 : i32
    %c8_i32_34 = arith.constant 8 : i32
    %72 = arith.muli %c2_i32, %c8_i32_34 : i32
    %73 = tpu.assume_multiple %72, 8 : i32
    %74 = arith.index_cast %73 : i32 to index
    %c0_35 = arith.constant 0 : index
    %75 = vector.load %arg6[%74, %c0_35] : memref<64x32xf32, #tpu.memory_space<vmem>>, vector<8x32xf32>
    %76 = arith.mulf %75, %60 : vector<8x32xf32>
    %77 = arith.index_cast %73 : i32 to index
    %c0_36 = arith.constant 0 : index
    %78 = vector.load %arg7[%77, %c0_36] : memref<64x32xf32, #tpu.memory_space<vmem>>, vector<8x32xf32>
    %79 = arith.addf %76, %78 : vector<8x32xf32>
    %80 = arith.index_cast %73 : i32 to index
    %c0_37 = arith.constant 0 : index
    %81 = vector.load %arg8[%80, %c0_37] : memref<64x32xf32, #tpu.memory_space<vmem>>, vector<8x32xf32>
    %82 = math.tanh %79 : vector<8x32xf32>
    %83 = arith.mulf %81, %82 : vector<8x32xf32>
    %84 = arith.index_cast %73 : i32 to index
    %c0_38 = arith.constant 0 : index
    %85 = vector.load %arg9[%84, %c0_38] : memref<64x32xf32, #tpu.memory_space<vmem>>, vector<8x32xf32>
    %86 = arith.addf %83, %85 : vector<8x32xf32>
    %87 = arith.index_cast %c2_i32 : i32 to index
    %c0_39 = arith.constant 0 : index
    %c0_40 = arith.constant 0 : index
    %88 = vector.load %arg4[%87, %c0_39, %c0_40] : memref<8x8x32xf32, #tpu.memory_space<vmem>>, vector<1x8x32xf32>
    %89 = vector.shape_cast %88 : vector<1x8x32xf32> to vector<8x32xf32>
    %90 = vector.shape_cast %86 : vector<8x32xf32> to vector<1x8x32xf32>
    tpu.vector_store %arg4[%87, %c0_39, %c0_40], %90 {strides = array<i32>} : memref<8x8x32xf32, #tpu.memory_space<vmem>>, vector<1x8x32xf32>,
    %c3_i32 = arith.constant 3 : i32
    %c8_i32_41 = arith.constant 8 : i32
    %91 = arith.muli %c3_i32, %c8_i32_41 : i32
    %92 = tpu.assume_multiple %91, 8 : i32
    %93 = arith.index_cast %92 : i32 to index
    %c0_42 = arith.constant 0 : index
    %94 = vector.load %arg6[%93, %c0_42] : memref<64x32xf32, #tpu.memory_space<vmem>>, vector<8x32xf32>
    %95 = arith.mulf %94, %79 : vector<8x32xf32>
    %96 = arith.index_cast %92 : i32 to index
    %c0_43 = arith.constant 0 : index
    %97 = vector.load %arg7[%96, %c0_43] : memref<64x32xf32, #tpu.memory_space<vmem>>, vector<8x32xf32>
    %98 = arith.addf %95, %97 : vector<8x32xf32>
    %99 = arith.index_cast %92 : i32 to index
    %c0_44 = arith.constant 0 : index
    %100 = vector.load %arg8[%99, %c0_44] : memref<64x32xf32, #tpu.memory_space<vmem>>, vector<8x32xf32>
    %101 = math.tanh %98 : vector<8x32xf32>
    %102 = arith.mulf %100, %101 : vector<8x32xf32>
    %103 = arith.index_cast %92 : i32 to index
    %c0_45 = arith.constant 0 : index
    %104 = vector.load %arg9[%103, %c0_45] : memref<64x32xf32, #tpu.memory_space<vmem>>, vector<8x32xf32>
    %105 = arith.addf %102, %104 : vector<8x32xf32>
    %106 = arith.index_cast %c3_i32 : i32 to index
    %c0_46 = arith.constant 0 : index
    %c0_47 = arith.constant 0 : index
    %107 = vector.load %arg4[%106, %c0_46, %c0_47] : memref<8x8x32xf32, #tpu.memory_space<vmem>>, vector<1x8x32xf32>
    %108 = vector.shape_cast %107 : vector<1x8x32xf32> to vector<8x32xf32>
    %109 = vector.shape_cast %105 : vector<8x32xf32> to vector<1x8x32xf32>
    tpu.vector_store %arg4[%106, %c0_46, %c0_47], %109 {strides = array<i32>} : memref<8x8x32xf32, #tpu.memory_space<vmem>>, vector<1x8x32xf32>,
    %c4_i32 = arith.constant 4 : i32
    %c8_i32_48 = arith.constant 8 : i32
    %110 = arith.muli %c4_i32, %c8_i32_48 : i32
    %111 = tpu.assume_multiple %110, 8 : i32
    %112 = arith.index_cast %111 : i32 to index
    %c0_49 = arith.constant 0 : index
    %113 = vector.load %arg6[%112, %c0_49] : memref<64x32xf32, #tpu.memory_space<vmem>>, vector<8x32xf32>
    %114 = arith.mulf %113, %98 : vector<8x32xf32>
    %115 = arith.index_cast %111 : i32 to index
    %c0_50 = arith.constant 0 : index
    %116 = vector.load %arg7[%115, %c0_50] : memref<64x32xf32, #tpu.memory_space<vmem>>, vector<8x32xf32>
    %117 = arith.addf %114, %116 : vector<8x32xf32>
    %118 = arith.index_cast %111 : i32 to index
    %c0_51 = arith.constant 0 : index
    %119 = vector.load %arg8[%118, %c0_51] : memref<64x32xf32, #tpu.memory_space<vmem>>, vector<8x32xf32>
    %120 = math.tanh %117 : vector<8x32xf32>
    %121 = arith.mulf %119, %120 : vector<8x32xf32>
    %122 = arith.index_cast %111 : i32 to index
    %c0_52 = arith.constant 0 : index
    %123 = vector.load %arg9[%122, %c0_52] : memref<64x32xf32, #tpu.memory_space<vmem>>, vector<8x32xf32>
    %124 = arith.addf %121, %123 : vector<8x32xf32>
    %125 = arith.index_cast %c4_i32 : i32 to index
    %c0_53 = arith.constant 0 : index
    %c0_54 = arith.constant 0 : index
    %126 = vector.load %arg4[%125, %c0_53, %c0_54] : memref<8x8x32xf32, #tpu.memory_space<vmem>>, vector<1x8x32xf32>
    %127 = vector.shape_cast %126 : vector<1x8x32xf32> to vector<8x32xf32>
    %128 = vector.shape_cast %124 : vector<8x32xf32> to vector<1x8x32xf32>
    tpu.vector_store %arg4[%125, %c0_53, %c0_54], %128 {strides = array<i32>} : memref<8x8x32xf32, #tpu.memory_space<vmem>>, vector<1x8x32xf32>,
    %c5_i32 = arith.constant 5 : i32
    %c8_i32_55 = arith.constant 8 : i32
    %129 = arith.muli %c5_i32, %c8_i32_55 : i32
    %130 = tpu.assume_multiple %129, 8 : i32
    %131 = arith.index_cast %130 : i32 to index
    %c0_56 = arith.constant 0 : index
    %132 = vector.load %arg6[%131, %c0_56] : memref<64x32xf32, #tpu.memory_space<vmem>>, vector<8x32xf32>
    %133 = arith.mulf %132, %117 : vector<8x32xf32>
    %134 = arith.index_cast %130 : i32 to index
    %c0_57 = arith.constant 0 : index
    %135 = vector.load %arg7[%134, %c0_57] : memref<64x32xf32, #tpu.memory_space<vmem>>, vector<8x32xf32>
    %136 = arith.addf %133, %135 : vector<8x32xf32>
    %137 = arith.index_cast %130 : i32 to index
    %c0_58 = arith.constant 0 : index
    %138 = vector.load %arg8[%137, %c0_58] : memref<64x32xf32, #tpu.memory_space<vmem>>, vector<8x32xf32>
    %139 = math.tanh %136 : vector<8x32xf32>
    %140 = arith.mulf %138, %139 : vector<8x32xf32>
    %141 = arith.index_cast %130 : i32 to index
    %c0_59 = arith.constant 0 : index
    %142 = vector.load %arg9[%141, %c0_59] : memref<64x32xf32, #tpu.memory_space<vmem>>, vector<8x32xf32>
    %143 = arith.addf %140, %142 : vector<8x32xf32>
    %144 = arith.index_cast %c5_i32 : i32 to index
    %c0_60 = arith.constant 0 : index
    %c0_61 = arith.constant 0 : index
    %145 = vector.load %arg4[%144, %c0_60, %c0_61] : memref<8x8x32xf32, #tpu.memory_space<vmem>>, vector<1x8x32xf32>
    %146 = vector.shape_cast %145 : vector<1x8x32xf32> to vector<8x32xf32>
    %147 = vector.shape_cast %143 : vector<8x32xf32> to vector<1x8x32xf32>
    tpu.vector_store %arg4[%144, %c0_60, %c0_61], %147 {strides = array<i32>} : memref<8x8x32xf32, #tpu.memory_space<vmem>>, vector<1x8x32xf32>,
    %c6_i32 = arith.constant 6 : i32
    %c8_i32_62 = arith.constant 8 : i32
    %148 = arith.muli %c6_i32, %c8_i32_62 : i32
    %149 = tpu.assume_multiple %148, 8 : i32
    %150 = arith.index_cast %149 : i32 to index
    %c0_63 = arith.constant 0 : index
    %151 = vector.load %arg6[%150, %c0_63] : memref<64x32xf32, #tpu.memory_space<vmem>>, vector<8x32xf32>
    %152 = arith.mulf %151, %136 : vector<8x32xf32>
    %153 = arith.index_cast %149 : i32 to index
    %c0_64 = arith.constant 0 : index
    %154 = vector.load %arg7[%153, %c0_64] : memref<64x32xf32, #tpu.memory_space<vmem>>, vector<8x32xf32>
    %155 = arith.addf %152, %154 : vector<8x32xf32>
    %156 = arith.index_cast %149 : i32 to index
    %c0_65 = arith.constant 0 : index
    %157 = vector.load %arg8[%156, %c0_65] : memref<64x32xf32, #tpu.memory_space<vmem>>, vector<8x32xf32>
    %158 = math.tanh %155 : vector<8x32xf32>
    %159 = arith.mulf %157, %158 : vector<8x32xf32>
    %160 = arith.index_cast %149 : i32 to index
    %c0_66 = arith.constant 0 : index
    %161 = vector.load %arg9[%160, %c0_66] : memref<64x32xf32, #tpu.memory_space<vmem>>, vector<8x32xf32>
    %162 = arith.addf %159, %161 : vector<8x32xf32>
    %163 = arith.index_cast %c6_i32 : i32 to index
    %c0_67 = arith.constant 0 : index
    %c0_68 = arith.constant 0 : index
    %164 = vector.load %arg4[%163, %c0_67, %c0_68] : memref<8x8x32xf32, #tpu.memory_space<vmem>>, vector<1x8x32xf32>
    %165 = vector.shape_cast %164 : vector<1x8x32xf32> to vector<8x32xf32>
    %166 = vector.shape_cast %162 : vector<8x32xf32> to vector<1x8x32xf32>
    tpu.vector_store %arg4[%163, %c0_67, %c0_68], %166 {strides = array<i32>} : memref<8x8x32xf32, #tpu.memory_space<vmem>>, vector<1x8x32xf32>,
    %c7_i32 = arith.constant 7 : i32
    %c8_i32_69 = arith.constant 8 : i32
    %167 = arith.muli %c7_i32, %c8_i32_69 : i32
    %168 = tpu.assume_multiple %167, 8 : i32
    %169 = arith.index_cast %168 : i32 to index
    %c0_70 = arith.constant 0 : index
    %170 = vector.load %arg6[%169, %c0_70] : memref<64x32xf32, #tpu.memory_space<vmem>>, vector<8x32xf32>
    %171 = arith.mulf %170, %155 : vector<8x32xf32>
    %172 = arith.index_cast %168 : i32 to index
    %c0_71 = arith.constant 0 : index
    %173 = vector.load %arg7[%172, %c0_71] : memref<64x32xf32, #tpu.memory_space<vmem>>, vector<8x32xf32>
    %174 = arith.addf %171, %173 : vector<8x32xf32>
    %175 = arith.index_cast %168 : i32 to index
    %c0_72 = arith.constant 0 : index
    %176 = vector.load %arg8[%175, %c0_72] : memref<64x32xf32, #tpu.memory_space<vmem>>, vector<8x32xf32>
    %177 = math.tanh %174 : vector<8x32xf32>
    %178 = arith.mulf %176, %177 : vector<8x32xf32>
    %179 = arith.index_cast %168 : i32 to index
    %c0_73 = arith.constant 0 : index
    %180 = vector.load %arg9[%179, %c0_73] : memref<64x32xf32, #tpu.memory_space<vmem>>, vector<8x32xf32>
    %181 = arith.addf %178, %180 : vector<8x32xf32>
    %182 = arith.index_cast %c7_i32 : i32 to index
    %c0_74 = arith.constant 0 : index
    %c0_75 = arith.constant 0 : index
    %183 = vector.load %arg4[%182, %c0_74, %c0_75] : memref<8x8x32xf32, #tpu.memory_space<vmem>>, vector<1x8x32xf32>
    %184 = vector.shape_cast %183 : vector<1x8x32xf32> to vector<8x32xf32>
    %185 = vector.shape_cast %181 : vector<8x32xf32> to vector<1x8x32xf32>
    tpu.vector_store %arg4[%182, %c0_74, %c0_75], %185 {strides = array<i32>} : memref<8x8x32xf32, #tpu.memory_space<vmem>>, vector<1x8x32xf32>,
    %c8_i32_76 = arith.constant 8 : i32
    %c0_77 = arith.constant 0 : index
    %c0_78 = arith.constant 0 : index
    %186 = vector.load %arg5[%c0_77, %c0_78] : memref<8x32xf32, #tpu.memory_space<vmem>>, vector<8x32xf32>
    tpu.vector_store %arg5[%c0_77, %c0_78], %174 {strides = array<i32>} : memref<8x32xf32, #tpu.memory_space<vmem>>, vector<8x32xf32>,
    return
  }
  func.func @transform_0(%arg0: i32) -> (i32, i32) {
    %c0_i32 = arith.constant 0 : i32
    %c0_i32_0 = arith.constant 0 : i32
    return %arg0, %c0_i32 : i32, i32
  }
  func.func @transform_1(%arg0: i32) -> (i32, i32) {
    %c0_i32 = arith.constant 0 : i32
    %c0_i32_0 = arith.constant 0 : i32
    %c0_i32_1 = arith.constant 0 : i32
    return %c0_i32, %c0_i32_0 : i32, i32
  }
  func.func @transform_2(%arg0: i32) -> (i32, i32) {
    %c0_i32 = arith.constant 0 : i32
    %c0_i32_0 = arith.constant 0 : i32
    %c0_i32_1 = arith.constant 0 : i32
    return %c0_i32, %c0_i32_0 : i32, i32
  }
  func.func @transform_3(%arg0: i32) -> (i32, i32, i32) {
    %c0_i32 = arith.constant 0 : i32
    %c0_i32_0 = arith.constant 0 : i32
    %c0_i32_1 = arith.constant 0 : i32
    return %arg0, %c0_i32, %c0_i32_0 : i32, i32, i32
  }
}

module attributes {stable_mosaic.version = 11 : i64} {
  func.func @_sru_chunk_kernel(%arg0: i32, %arg1: memref<64x32xf32, #tpu.memory_space<vmem>>, %arg2: memref<32x128xf32, #tpu.memory_space<vmem>>, %arg3: memref<1x128xf32, #tpu.memory_space<vmem>>, %arg4: memref<8x8x32xf32, #tpu.memory_space<vmem>>, %arg5: memref<8x32xf32, #tpu.memory_space<vmem>>, %arg6: memref<64x32xf32, #tpu.memory_space<vmem>>, %arg7: memref<64x32xf32, #tpu.memory_space<vmem>>, %arg8: memref<64x32xf32, #tpu.memory_space<vmem>>, %arg9: memref<64x32xf32, #tpu.memory_space<vmem>>) attributes {dimension_semantics = [#tpu.dimension_semantics<arbitrary>], iteration_bounds = array<i64: 1>, scalar_prefetch = 0 : i64, scratch_operands = 5 : i64, tpu.core_type = #tpu.core_type<tc>, window_params = [{transform_indices = @transform_0, window_bounds = array<i64: 64, 32>}, {pipeline_mode = #tpu.pipeline_mode<synchronous>, transform_indices = @transform_1, window_bounds = array<i64: 32, 128>}, {pipeline_mode = #tpu.pipeline_mode<synchronous>, transform_indices = @transform_2, window_bounds = array<i64: 1, 128>}, {transform_indices = @transform_3, window_bounds = array<i64: 8, 8, 32>}]} {
    %c0_i32 = arith.constant 0 : i32
    %0 = arith.cmpi eq, %arg0, %c0_i32 : i32
    %1 = arith.extui %0 : i1 to i32
    %c0_i32_0 = arith.constant 0 : i32
    %2 = arith.cmpi ne, %1, %c0_i32_0 : i32
    scf.if %2 {
      %cst_79 = arith.constant 0.000000e+00 : f32
      %187 = vector.broadcast %cst_79 : f32 to vector<8x32xf32>
      %c0_80 = arith.constant 0 : index
      %c0_81 = arith.constant 0 : index
      %188 = vector.load %arg5[%c0_80, %c0_81] : memref<8x32xf32, #tpu.memory_space<vmem>>, vector<8x32xf32>
      tpu.vector_store %arg5[%c0_80, %c0_81], %187 {strides = array<i32>} : memref<8x32xf32, #tpu.memory_space<vmem>>, vector<8x32xf32>,
    } else {
    }
    %c0 = arith.constant 0 : index
    %c0_1 = arith.constant 0 : index
    %3 = vector.load %arg1[%c0, %c0_1] : memref<64x32xf32, #tpu.memory_space<vmem>>, vector<64x32xf32>
    %c0_2 = arith.constant 0 : index
    %c0_3 = arith.constant 0 : index
    %4 = vector.load %arg2[%c0_2, %c0_3] : memref<32x128xf32, #tpu.memory_space<vmem>>, vector<32x128xf32>
    %cst = arith.constant dense<0.000000e+00> : vector<64x128xf32>
    %5 = tpu.matmul %3, %4, %cst {dimension_numbers = #tpu.dot_dimension_numbers<[1], [0], [0], [1], [0, 0, 1, 1], [], []>} : vector<64x32xf32>, vector<32x128xf32>, vector<64x128xf32> -> vector<64x128xf32>
    %c0_4 = arith.constant 0 : index
    %c0_5 = arith.constant 0 : index
    %6 = vector.load %arg3[%c0_4, %c0_5] : memref<1x128xf32, #tpu.memory_space<vmem>>, vector<1x128xf32>
    %7 = vector.broadcast %6 : vector<1x128xf32> to vector<64x128xf32>
    %8 = arith.addf %5, %7 : vector<64x128xf32>
    %9 = vector.extract_strided_slice %8 {offsets = [0, 0], sizes = [64, 32], strides = [1, 1]} : vector<64x128xf32> to vector<64x32xf32>
    %10 = vector.extract_strided_slice %8 {offsets = [0, 32], sizes = [64, 32], strides = [1, 1]} : vector<64x128xf32> to vector<64x32xf32>
    %11 = arith.negf %10 : vector<64x32xf32>
    %12 = math.exp %11 : vector<64x32xf32>
    %cst_6 = arith.constant 1.000000e+00 : f32
    %13 = vector.broadcast %cst_6 : f32 to vector<64x32xf32>
    %14 = arith.addf %13, %12 : vector<64x32xf32>
    %15 = arith.divf %13, %14 : vector<64x32xf32>
    %16 = vector.extract_strided_slice %8 {offsets = [0, 64], sizes = [64, 32], strides = [1, 1]} : vector<64x128xf32> to vector<64x32xf32>
    %17 = arith.negf %16 : vector<64x32xf32>
    %18 = math.exp %17 : vector<64x32xf32>
    %cst_7 = arith.constant 1.000000e+00 : f32
    %19 = vector.broadcast %cst_7 : f32 to vector<64x32xf32>
    %20 = arith.addf %19, %18 : vector<64x32xf32>
    %21 = arith.divf %19, %20 : vector<64x32xf32>
    %22 = vector.extract_strided_slice %8 {offsets = [0, 96], sizes = [64, 32], strides = [1, 1]} : vector<64x128xf32> to vector<64x32xf32>
    %c0_8 = arith.constant 0 : index
    %c0_9 = arith.constant 0 : index
    %23 = vector.load %arg6[%c0_8, %c0_9] : memref<64x32xf32, #tpu.memory_space<vmem>>, vector<64x32xf32>
    tpu.vector_store %arg6[%c0_8, %c0_9], %15 {strides = array<i32>} : memref<64x32xf32, #tpu.memory_space<vmem>>, vector<64x32xf32>,
    %cst_10 = arith.constant 1.000000e+00 : f32
    %24 = vector.broadcast %cst_10 : f32 to vector<64x32xf32>
    %25 = arith.subf %24, %15 : vector<64x32xf32>
    %26 = arith.mulf %25, %9 : vector<64x32xf32>
    %c0_11 = arith.constant 0 : index
    %c0_12 = arith.constant 0 : index
    %27 = vector.load %arg7[%c0_11, %c0_12] : memref<64x32xf32, #tpu.memory_space<vmem>>, vector<64x32xf32>
    tpu.vector_store %arg7[%c0_11, %c0_12], %26 {strides = array<i32>} : memref<64x32xf32, #tpu.memory_space<vmem>>, vector<64x32xf32>,
    %c0_13 = arith.constant 0 : index
    %c0_14 = arith.constant 0 : index
    %28 = vector.load %arg8[%c0_13, %c0_14] : memref<64x32xf32, #tpu.memory_space<vmem>>, vector<64x32xf32>
    tpu.vector_store %arg8[%c0_13, %c0_14], %21 {strides = array<i32>} : memref<64x32xf32, #tpu.memory_space<vmem>>, vector<64x32xf32>,
    %cst_15 = arith.constant 1.000000e+00 : f32
    %29 = vector.broadcast %cst_15 : f32 to vector<64x32xf32>
    %30 = arith.subf %29, %21 : vector<64x32xf32>
    %31 = arith.mulf %30, %22 : vector<64x32xf32>
    %c0_16 = arith.constant 0 : index
    %c0_17 = arith.constant 0 : index
    %32 = vector.load %arg9[%c0_16, %c0_17] : memref<64x32xf32, #tpu.memory_space<vmem>>, vector<64x32xf32>
    tpu.vector_store %arg9[%c0_16, %c0_17], %31 {strides = array<i32>} : memref<64x32xf32, #tpu.memory_space<vmem>>, vector<64x32xf32>,
    %c0_18 = arith.constant 0 : index
    %c0_19 = arith.constant 0 : index
    %33 = vector.load %arg5[%c0_18, %c0_19] : memref<8x32xf32, #tpu.memory_space<vmem>>, vector<8x32xf32>
    %c0_i32_20 = arith.constant 0 : i32
    %c8_i32 = arith.constant 8 : i32
    %34 = arith.muli %c0_i32_20, %c8_i32 : i32
    %35 = tpu.assume_multiple %34, 8 : i32
    %36 = arith.index_cast %35 : i32 to index
    %c0_21 = arith.constant 0 : index
    %37 = vector.load %arg6[%36, %c0_21] : memref<64x32xf32, #tpu.memory_space<vmem>>, vector<8x32xf32>
    %38 = arith.mulf %37, %33 : vector<8x32xf32>
    %39 = arith.index_cast %35 : i32 to index
    %c0_22 = arith.constant 0 : index
    %40 = vector.load %arg7[%39, %c0_22] : memref<64x32xf32, #tpu.memory_space<vmem>>, vector<8x32xf32>
    %41 = arith.addf %38, %40 : vector<8x32xf32>
    %42 = arith.index_cast %35 : i32 to index
    %c0_23 = arith.constant 0 : index
    %43 = vector.load %arg8[%42, %c0_23] : memref<64x32xf32, #tpu.memory_space<vmem>>, vector<8x32xf32>
    %44 = math.tanh %41 : vector<8x32xf32>
    %45 = arith.mulf %43, %44 : vector<8x32xf32>
    %46 = arith.index_cast %35 : i32 to index
    %c0_24 = arith.constant 0 : index
    %47 = vector.load %arg9[%46, %c0_24] : memref<64x32xf32, #tpu.memory_space<vmem>>, vector<8x32xf32>
    %48 = arith.addf %45, %47 : vector<8x32xf32>
    %49 = arith.index_cast %c0_i32_20 : i32 to index
    %c0_25 = arith.constant 0 : index
    %c0_26 = arith.constant 0 : index
    %50 = vector.load %arg4[%49, %c0_25, %c0_26] : memref<8x8x32xf32, #tpu.memory_space<vmem>>, vector<1x8x32xf32>
    %51 = vector.shape_cast %50 : vector<1x8x32xf32> to vector<8x32xf32>
    %52 = vector.shape_cast %48 : vector<8x32xf32> to vector<1x8x32xf32>
    tpu.vector_store %arg4[%49, %c0_25, %c0_26], %52 {strides = array<i32>} : memref<8x8x32xf32, #tpu.memory_space<vmem>>, vector<1x8x32xf32>,
    %c1_i32 = arith.constant 1 : i32
    %c8_i32_27 = arith.constant 8 : i32
    %53 = arith.muli %c1_i32, %c8_i32_27 : i32
    %54 = tpu.assume_multiple %53, 8 : i32
    %55 = arith.index_cast %54 : i32 to index
    %c0_28 = arith.constant 0 : index
    %56 = vector.load %arg6[%55, %c0_28] : memref<64x32xf32, #tpu.memory_space<vmem>>, vector<8x32xf32>
    %57 = arith.mulf %56, %41 : vector<8x32xf32>
    %58 = arith.index_cast %54 : i32 to index
    %c0_29 = arith.constant 0 : index
    %59 = vector.load %arg7[%58, %c0_29] : memref<64x32xf32, #tpu.memory_space<vmem>>, vector<8x32xf32>
    %60 = arith.addf %57, %59 : vector<8x32xf32>
    %61 = arith.index_cast %54 : i32 to index
    %c0_30 = arith.constant 0 : index
    %62 = vector.load %arg8[%61, %c0_30] : memref<64x32xf32, #tpu.memory_space<vmem>>, vector<8x32xf32>
    %63 = math.tanh %60 : vector<8x32xf32>
    %64 = arith.mulf %62, %63 : vector<8x32xf32>
    %65 = arith.index_cast %54 : i32 to index
    %c0_31 = arith.constant 0 : index
    %66 = vector.load %arg9[%65, %c0_31] : memref<64x32xf32, #tpu.memory_space<vmem>>, vector<8x32xf32>
    %67 = arith.addf %64, %66 : vector<8x32xf32>
    %68 = arith.index_cast %c1_i32 : i32 to index
    %c0_32 = arith.constant 0 : index
    %c0_33 = arith.constant 0 : index
    %69 = vector.load %arg4[%68, %c0_32, %c0_33] : memref<8x8x32xf32, #tpu.memory_space<vmem>>, vector<1x8x32xf32>
    %70 = vector.shape_cast %69 : vector<1x8x32xf32> to vector<8x32xf32>
    %71 = vector.shape_cast %67 : vector<8x32xf32> to vector<1x8x32xf32>
    tpu.vector_store %arg4[%68, %c0_32, %c0_33], %71 {strides = array<i32>} : memref<8x8x32xf32, #tpu.memory_space<vmem>>, vector<1x8x32xf32>,
    %c2_i32 = arith.constant 2 : i32
    %c8_i32_34 = arith.constant 8 : i32
    %72 = arith.muli %c2_i32, %c8_i32_34 : i32
    %73 = tpu.assume_multiple %72, 8 : i32
    %74 = arith.index_cast %73 : i32 to index
    %c0_35 = arith.constant 0 : index
    %75 = vector.load %arg6[%74, %c0_35] : memref<64x32xf32, #tpu.memory_space<vmem>>, vector<8x32xf32>
    %76 = arith.mulf %75, %60 : vector<8x32xf32>
    %77 = arith.index_cast %73 : i32 to index
    %c0_36 = arith.constant 0 : index
    %78 = vector.load %arg7[%77, %c0_36] : memref<64x32xf32, #tpu.memory_space<vmem>>, vector<8x32xf32>
    %79 = arith.addf %76, %78 : vector<8x32xf32>
    %80 = arith.index_cast %73 : i32 to index
    %c0_37 = arith.constant 0 : index
    %81 = vector.load %arg8[%80, %c0_37] : memref<64x32xf32, #tpu.memory_space<vmem>>, vector<8x32xf32>
    %82 = math.tanh %79 : vector<8x32xf32>
    %83 = arith.mulf %81, %82 : vector<8x32xf32>
    %84 = arith.index_cast %73 : i32 to index
    %c0_38 = arith.constant 0 : index
    %85 = vector.load %arg9[%84, %c0_38] : memref<64x32xf32, #tpu.memory_space<vmem>>, vector<8x32xf32>
    %86 = arith.addf %83, %85 : vector<8x32xf32>
    %87 = arith.index_cast %c2_i32 : i32 to index
    %c0_39 = arith.constant 0 : index
    %c0_40 = arith.constant 0 : index
    %88 = vector.load %arg4[%87, %c0_39, %c0_40] : memref<8x8x32xf32, #tpu.memory_space<vmem>>, vector<1x8x32xf32>
    %89 = vector.shape_cast %88 : vector<1x8x32xf32> to vector<8x32xf32>
    %90 = vector.shape_cast %86 : vector<8x32xf32> to vector<1x8x32xf32>
    tpu.vector_store %arg4[%87, %c0_39, %c0_40], %90 {strides = array<i32>} : memref<8x8x32xf32, #tpu.memory_space<vmem>>, vector<1x8x32xf32>,
    %c3_i32 = arith.constant 3 : i32
    %c8_i32_41 = arith.constant 8 : i32
    %91 = arith.muli %c3_i32, %c8_i32_41 : i32
    %92 = tpu.assume_multiple %91, 8 : i32
    %93 = arith.index_cast %92 : i32 to index
    %c0_42 = arith.constant 0 : index
    %94 = vector.load %arg6[%93, %c0_42] : memref<64x32xf32, #tpu.memory_space<vmem>>, vector<8x32xf32>
    %95 = arith.mulf %94, %79 : vector<8x32xf32>
    %96 = arith.index_cast %92 : i32 to index
    %c0_43 = arith.constant 0 : index
    %97 = vector.load %arg7[%96, %c0_43] : memref<64x32xf32, #tpu.memory_space<vmem>>, vector<8x32xf32>
    %98 = arith.addf %95, %97 : vector<8x32xf32>
    %99 = arith.index_cast %92 : i32 to index
    %c0_44 = arith.constant 0 : index
    %100 = vector.load %arg8[%99, %c0_44] : memref<64x32xf32, #tpu.memory_space<vmem>>, vector<8x32xf32>
    %101 = math.tanh %98 : vector<8x32xf32>
    %102 = arith.mulf %100, %101 : vector<8x32xf32>
    %103 = arith.index_cast %92 : i32 to index
    %c0_45 = arith.constant 0 : index
    %104 = vector.load %arg9[%103, %c0_45] : memref<64x32xf32, #tpu.memory_space<vmem>>, vector<8x32xf32>
    %105 = arith.addf %102, %104 : vector<8x32xf32>
    %106 = arith.index_cast %c3_i32 : i32 to index
    %c0_46 = arith.constant 0 : index
    %c0_47 = arith.constant 0 : index
    %107 = vector.load %arg4[%106, %c0_46, %c0_47] : memref<8x8x32xf32, #tpu.memory_space<vmem>>, vector<1x8x32xf32>
    %108 = vector.shape_cast %107 : vector<1x8x32xf32> to vector<8x32xf32>
    %109 = vector.shape_cast %105 : vector<8x32xf32> to vector<1x8x32xf32>
    tpu.vector_store %arg4[%106, %c0_46, %c0_47], %109 {strides = array<i32>} : memref<8x8x32xf32, #tpu.memory_space<vmem>>, vector<1x8x32xf32>,
    %c4_i32 = arith.constant 4 : i32
    %c8_i32_48 = arith.constant 8 : i32
    %110 = arith.muli %c4_i32, %c8_i32_48 : i32
    %111 = tpu.assume_multiple %110, 8 : i32
    %112 = arith.index_cast %111 : i32 to index
    %c0_49 = arith.constant 0 : index
    %113 = vector.load %arg6[%112, %c0_49] : memref<64x32xf32, #tpu.memory_space<vmem>>, vector<8x32xf32>
    %114 = arith.mulf %113, %98 : vector<8x32xf32>
    %115 = arith.index_cast %111 : i32 to index
    %c0_50 = arith.constant 0 : index
    %116 = vector.load %arg7[%115, %c0_50] : memref<64x32xf32, #tpu.memory_space<vmem>>, vector<8x32xf32>
    %117 = arith.addf %114, %116 : vector<8x32xf32>
    %118 = arith.index_cast %111 : i32 to index
    %c0_51 = arith.constant 0 : index
    %119 = vector.load %arg8[%118, %c0_51] : memref<64x32xf32, #tpu.memory_space<vmem>>, vector<8x32xf32>
    %120 = math.tanh %117 : vector<8x32xf32>
    %121 = arith.mulf %119, %120 : vector<8x32xf32>
    %122 = arith.index_cast %111 : i32 to index
    %c0_52 = arith.constant 0 : index
    %123 = vector.load %arg9[%122, %c0_52] : memref<64x32xf32, #tpu.memory_space<vmem>>, vector<8x32xf32>
    %124 = arith.addf %121, %123 : vector<8x32xf32>
    %125 = arith.index_cast %c4_i32 : i32 to index
    %c0_53 = arith.constant 0 : index
    %c0_54 = arith.constant 0 : index
    %126 = vector.load %arg4[%125, %c0_53, %c0_54] : memref<8x8x32xf32, #tpu.memory_space<vmem>>, vector<1x8x32xf32>
    %127 = vector.shape_cast %126 : vector<1x8x32xf32> to vector<8x32xf32>
    %128 = vector.shape_cast %124 : vector<8x32xf32> to vector<1x8x32xf32>
    tpu.vector_store %arg4[%125, %c0_53, %c0_54], %128 {strides = array<i32>} : memref<8x8x32xf32, #tpu.memory_space<vmem>>, vector<1x8x32xf32>,
    %c5_i32 = arith.constant 5 : i32
    %c8_i32_55 = arith.constant 8 : i32
    %129 = arith.muli %c5_i32, %c8_i32_55 : i32
    %130 = tpu.assume_multiple %129, 8 : i32
    %131 = arith.index_cast %130 : i32 to index
    %c0_56 = arith.constant 0 : index
    %132 = vector.load %arg6[%131, %c0_56] : memref<64x32xf32, #tpu.memory_space<vmem>>, vector<8x32xf32>
    %133 = arith.mulf %132, %117 : vector<8x32xf32>
    %134 = arith.index_cast %130 : i32 to index
    %c0_57 = arith.constant 0 : index
    %135 = vector.load %arg7[%134, %c0_57] : memref<64x32xf32, #tpu.memory_space<vmem>>, vector<8x32xf32>
    %136 = arith.addf %133, %135 : vector<8x32xf32>
    %137 = arith.index_cast %130 : i32 to index
    %c0_58 = arith.constant 0 : index
    %138 = vector.load %arg8[%137, %c0_58] : memref<64x32xf32, #tpu.memory_space<vmem>>, vector<8x32xf32>
    %139 = math.tanh %136 : vector<8x32xf32>
    %140 = arith.mulf %138, %139 : vector<8x32xf32>
    %141 = arith.index_cast %130 : i32 to index
    %c0_59 = arith.constant 0 : index
    %142 = vector.load %arg9[%141, %c0_59] : memref<64x32xf32, #tpu.memory_space<vmem>>, vector<8x32xf32>
    %143 = arith.addf %140, %142 : vector<8x32xf32>
    %144 = arith.index_cast %c5_i32 : i32 to index
    %c0_60 = arith.constant 0 : index
    %c0_61 = arith.constant 0 : index
    %145 = vector.load %arg4[%144, %c0_60, %c0_61] : memref<8x8x32xf32, #tpu.memory_space<vmem>>, vector<1x8x32xf32>
    %146 = vector.shape_cast %145 : vector<1x8x32xf32> to vector<8x32xf32>
    %147 = vector.shape_cast %143 : vector<8x32xf32> to vector<1x8x32xf32>
    tpu.vector_store %arg4[%144, %c0_60, %c0_61], %147 {strides = array<i32>} : memref<8x8x32xf32, #tpu.memory_space<vmem>>, vector<1x8x32xf32>,
    %c6_i32 = arith.constant 6 : i32
    %c8_i32_62 = arith.constant 8 : i32
    %148 = arith.muli %c6_i32, %c8_i32_62 : i32
    %149 = tpu.assume_multiple %148, 8 : i32
    %150 = arith.index_cast %149 : i32 to index
    %c0_63 = arith.constant 0 : index
    %151 = vector.load %arg6[%150, %c0_63] : memref<64x32xf32, #tpu.memory_space<vmem>>, vector<8x32xf32>
    %152 = arith.mulf %151, %136 : vector<8x32xf32>
    %153 = arith.index_cast %149 : i32 to index
    %c0_64 = arith.constant 0 : index
    %154 = vector.load %arg7[%153, %c0_64] : memref<64x32xf32, #tpu.memory_space<vmem>>, vector<8x32xf32>
    %155 = arith.addf %152, %154 : vector<8x32xf32>
    %156 = arith.index_cast %149 : i32 to index
    %c0_65 = arith.constant 0 : index
    %157 = vector.load %arg8[%156, %c0_65] : memref<64x32xf32, #tpu.memory_space<vmem>>, vector<8x32xf32>
    %158 = math.tanh %155 : vector<8x32xf32>
    %159 = arith.mulf %157, %158 : vector<8x32xf32>
    %160 = arith.index_cast %149 : i32 to index
    %c0_66 = arith.constant 0 : index
    %161 = vector.load %arg9[%160, %c0_66] : memref<64x32xf32, #tpu.memory_space<vmem>>, vector<8x32xf32>
    %162 = arith.addf %159, %161 : vector<8x32xf32>
    %163 = arith.index_cast %c6_i32 : i32 to index
    %c0_67 = arith.constant 0 : index
    %c0_68 = arith.constant 0 : index
    %164 = vector.load %arg4[%163, %c0_67, %c0_68] : memref<8x8x32xf32, #tpu.memory_space<vmem>>, vector<1x8x32xf32>
    %165 = vector.shape_cast %164 : vector<1x8x32xf32> to vector<8x32xf32>
    %166 = vector.shape_cast %162 : vector<8x32xf32> to vector<1x8x32xf32>
    tpu.vector_store %arg4[%163, %c0_67, %c0_68], %166 {strides = array<i32>} : memref<8x8x32xf32, #tpu.memory_space<vmem>>, vector<1x8x32xf32>,
    %c7_i32 = arith.constant 7 : i32
    %c8_i32_69 = arith.constant 8 : i32
    %167 = arith.muli %c7_i32, %c8_i32_69 : i32
    %168 = tpu.assume_multiple %167, 8 : i32
    %169 = arith.index_cast %168 : i32 to index
    %c0_70 = arith.constant 0 : index
    %170 = vector.load %arg6[%169, %c0_70] : memref<64x32xf32, #tpu.memory_space<vmem>>, vector<8x32xf32>
    %171 = arith.mulf %170, %155 : vector<8x32xf32>
    %172 = arith.index_cast %168 : i32 to index
    %c0_71 = arith.constant 0 : index
    %173 = vector.load %arg7[%172, %c0_71] : memref<64x32xf32, #tpu.memory_space<vmem>>, vector<8x32xf32>
    %174 = arith.addf %171, %173 : vector<8x32xf32>
    %175 = arith.index_cast %168 : i32 to index
    %c0_72 = arith.constant 0 : index
    %176 = vector.load %arg8[%175, %c0_72] : memref<64x32xf32, #tpu.memory_space<vmem>>, vector<8x32xf32>
    %177 = math.tanh %174 : vector<8x32xf32>
    %178 = arith.mulf %176, %177 : vector<8x32xf32>
    %179 = arith.index_cast %168 : i32 to index
    %c0_73 = arith.constant 0 : index
    %180 = vector.load %arg9[%179, %c0_73] : memref<64x32xf32, #tpu.memory_space<vmem>>, vector<8x32xf32>
    %181 = arith.addf %178, %180 : vector<8x32xf32>
    %182 = arith.index_cast %c7_i32 : i32 to index
    %c0_74 = arith.constant 0 : index
    %c0_75 = arith.constant 0 : index
    %183 = vector.load %arg4[%182, %c0_74, %c0_75] : memref<8x8x32xf32, #tpu.memory_space<vmem>>, vector<1x8x32xf32>
    %184 = vector.shape_cast %183 : vector<1x8x32xf32> to vector<8x32xf32>
    %185 = vector.shape_cast %181 : vector<8x32xf32> to vector<1x8x32xf32>
    tpu.vector_store %arg4[%182, %c0_74, %c0_75], %185 {strides = array<i32>} : memref<8x8x32xf32, #tpu.memory_space<vmem>>, vector<1x8x32xf32>,
    %c8_i32_76 = arith.constant 8 : i32
    %c0_77 = arith.constant 0 : index
    %c0_78 = arith.constant 0 : index
    %186 = vector.load %arg5[%c0_77, %c0_78] : memref<8x32xf32, #tpu.memory_space<vmem>>, vector<8x32xf32>
    tpu.vector_store %arg5[%c0_77, %c0_78], %174 {strides = array<i32>} : memref<8x32xf32, #tpu.memory_space<vmem>>, vector<8x32xf32>,
    return
  }
  func.func @transform_0(%arg0: i32) -> (i32, i32) {
    %c0_i32 = arith.constant 0 : i32
    %c0_i32_0 = arith.constant 0 : i32
    return %arg0, %c0_i32 : i32, i32
  }
  func.func @transform_1(%arg0: i32) -> (i32, i32) {
    %c0_i32 = arith.constant 0 : i32
    %c0_i32_0 = arith.constant 0 : i32
    %c0_i32_1 = arith.constant 0 : i32
    return %c0_i32, %c0_i32_0 : i32, i32
  }
  func.func @transform_2(%arg0: i32) -> (i32, i32) {
    %c0_i32 = arith.constant 0 : i32
    %c0_i32_0 = arith.constant 0 : i32
    %c0_i32_1 = arith.constant 0 : i32
    return %c0_i32, %c0_i32_0 : i32, i32
  }
  func.func @transform_3(%arg0: i32) -> (i32, i32, i32) {
    %c0_i32 = arith.constant 0 : i32
    %c0_i32_0 = arith.constant 0 : i32
    %c0_i32_1 = arith.constant 0 : i32
    return %arg0, %c0_i32, %c0_i32_0 : i32, i32, i32
  }
}

</mosaic_0001>

<llo_original>
// kernel: song2hum_forward.3
$region0: #{song2hum_forward.3}
  #allocation0 [shape = 'u32[]', space=smem, size = 0x4, offset = 0x4, fixed_abs, tag = 'smem constant byte address 0x4 - core index']
  #allocation1 [shape = 'u32[72,128]{1,0:T(1,128)}', space=vmem, size = 0x9000, scoped, tag = 'internal scratch']
  #allocation2 [shape = 'f32[8,32]{1,0:T(8,128)}', space=vmem, size = 0x1000, scoped, tag = 'scratch operand']
  #allocation3 [shape = 'f32[64,32]{1,0:T(8,128)}', space=vmem, size = 0x8000, scoped, tag = 'scratch operand']
  #allocation4 [shape = 'f32[64,32]{1,0:T(8,128)}', space=vmem, size = 0x8000, scoped, tag = 'scratch operand']
  #allocation5 [shape = 'f32[64,32]{1,0:T(8,128)}', space=vmem, size = 0x8000, scoped, tag = 'scratch operand']
  #allocation6 [shape = 'f32[64,32]{1,0:T(8,128)}', space=vmem, size = 0x8000, scoped, tag = 'scratch operand']
  %s0 = inlined_call_operand.vmem [shape: f32[64,32], index: 0, kind: input, shape index: {}]
  %s1 = inlined_call_operand.vmem [shape: f32[32,128], index: 1, kind: input, shape index: {}]
  %s2 = inlined_call_operand.vmem [shape: f32[1,128], index: 2, kind: input, shape index: {}]
  %s3 = inlined_call_operand.vmem [shape: f32[8,8,32], index: 3, kind: output, shape index: {}]
  %s4 = sld [smem:[#allocation0]]
  $region26: #{song2hum_forward.3} parent=0
    _
  %s6 = ssub.s32 1, %s4
  %s7 = scalar_select 0, %s6, %s4
  // Predicated region
  $region2: #{song2hum_forward.3} parent=0 // pred_check
    _
  $region3: #{song2hum_forward.3} parent=0 // pred_check_branch
    %9 = sbr.rel (0) target = $region5
  $region4: #{song2hum_forward.3} parent=0 // pred_region
    _
  $region5: #{song2hum_forward.3} parent=0 // pred_fallthru
    _
  // Predicated region
  $region6: #{song2hum_forward.3} parent=0 // pred_check
    _
  $region7: #{song2hum_forward.3} parent=0 // pred_check_branch
    %11 = sbr.rel (0) target = $region9
  $region8: #{song2hum_forward.3} parent=0 // pred_region
    _
  $region9: #{song2hum_forward.3} parent=0 // pred_fallthru
    _
  // Predicated region
  $region10: #{song2hum_forward.3} parent=0 // pred_check
    _
  $region11: #{song2hum_forward.3} parent=0 // pred_check_branch
    %13 = sbr.rel (0) target = $region13
  $region12: #{song2hum_forward.3} parent=0 // pred_region
    _
  $region13: #{song2hum_forward.3} parent=0 // pred_fallthru
    _
  %p14 = scmp.eq.s32.totalorder 0, 0
  // Predicated region
  $region14: #{song2hum_forward.3} parent=0 // pred_check
    %p15 = pneg %p14
  $region15: #{song2hum_forward.3} parent=0 // pred_check_branch
    %17 = sbr.rel (%p15) target = $region17
  $region16: #{song2hum_forward.3} parent=0 // pred_region
    %vm18 = vcmask 261120
    %19 = vst.msk [vmem:[#allocation2] sm:$0xff] %vm18, 0.0
  $region17: #{song2hum_forward.3} parent=0 // pred_fallthru
    _
  %v20 = vld [vmem:[%s0] sm:$0xff]
  %v21 = vld [vmem:[%s0 + $0x8] sm:$0xff]
  %v22 = vld [vmem:[%s0 + $0x10] sm:$0xff]
  %v23 = vld [vmem:[%s0 + $0x18] sm:$0xff]
  %v24 = vld [vmem:[%s0 + $0x20] sm:$0xff]
  %v25 = vld [vmem:[%s0 + $0x28] sm:$0xff]
  %v26 = vld [vmem:[%s0 + $0x30] sm:$0xff]
  %v27 = vld [vmem:[%s0 + $0x38] sm:$0xff]
  %v28 = vld [vmem:[%s1] sm:$0xff]
  %v29 = vld [vmem:[%s1 + $0x8] sm:$0xff]
  %v30 = vld [vmem:[%s1 + $0x10] sm:$0xff]
  %v31 = vld [vmem:[%s1 + $0x18] sm:$0xff]
  %v32 = vld [vmem:[%s2] sm:$0x1]
  %v34 = vperm.slane %v32, 0
  %vm36 = vcmask 261120
  %v38 = vsel %vm36, %v20, 0
  %v41 = vsel %vm36, %v21, 0
  %v44 = vsel %vm36, %v22, 0
  %v47 = vsel %vm36, %v23, 0
  %v50 = vsel %vm36, %v24, 0
  %v53 = vsel %vm36, %v25, 0
  %v56 = vsel %vm36, %v26, 0
  %v59 = vsel %vm36, %v27, 0
  %61 = vmatpush.msra.mxu0 0.0
  %62 = vmatpush.msra.mxu0 0.0
  %63 = vmatpush.msra.mxu0 0.0
  %64 = vmatpush.msra.mxu0 0.0
  %65 = vmatpush.msra.mxu0 0.0
  %66 = vmatpush.msra.mxu0 0.0
  %67 = vmatpush.msra.mxu0 0.0
  %68 = vmatpush.msra.mxu0 0.0
  %69 = vmatpush.msra.mxu0 0.0
  %70 = vmatpush.msra.mxu0 0.0
  %71 = vmatpush.msra.mxu0 0.0
  %72 = vmatpush.msra.mxu0 0.0
  %73 = vmatpush.msra.mxu0 %v31
  %74 = vmatpush.msra.mxu0 %v30
  %75 = vmatpush.msra.mxu0 %v29
  %76 = vmatpush.msra.mxu0 %v28
  %77 = vmatmul.f32.gmra.mxu0 %v38
  %v78 = vpop.f32.mrf.mxu0
  %v79 = vadd.f32 %v34, %v78
  %80 = vmatmul.f32.gmra.mxu0 %v41
  %v81 = vpop.f32.mrf.mxu0
  %v82 = vadd.f32 %v34, %v81
  %83 = vmatmul.f32.gmra.mxu0 %v44
  %v84 = vpop.f32.mrf.mxu0
  %v85 = vadd.f32 %v34, %v84
  %86 = vmatmul.f32.gmra.mxu0 %v47
  %v87 = vpop.f32.mrf.mxu0
  %v88 = vadd.f32 %v34, %v87
  %89 = vmatmul.f32.gmra.mxu0 %v50
  %v90 = vpop.f32.mrf.mxu0
  %v91 = vadd.f32 %v34, %v90
  %92 = vmatmul.f32.gmra.mxu0 %v53
  %v93 = vpop.f32.mrf.mxu0
  %v94 = vadd.f32 %v34, %v93
  %95 = vmatmul.f32.gmra.mxu0 %v56
  %v96 = vpop.f32.mrf.mxu0
  %v97 = vadd.f32 %v34, %v96
  %98 = vmatmul.f32.gmra.mxu0 %v59
  %v99 = vpop.f32.mrf.mxu0
  %v100 = vadd.f32 %v34, %v99
  %101 = vdwg.mxu0
  %v102 = vxor.u32 %v79, 2147483648
  %v103 = vxor.u32 %v82, 2147483648
  %v104 = vxor.u32 %v85, 2147483648
  %v105 = vxor.u32 %v88, 2147483648
  %v106 = vxor.u32 %v91, 2147483648
  %v107 = vxor.u32 %v94, 2147483648
  %v108 = vxor.u32 %v97, 2147483648
  %v109 = vxor.u32 %v100, 2147483648
  %v110 = vmul.f32 %v102, 1.442695
  %v111 = vpow.pop %v110
  %v112 = vmul.f32 %v103, 1.442695
  %v113 = vpow.pop %v112
  %v114 = vmul.f32 %v104, 1.442695
  %v115 = vpow.pop %v114
  %v116 = vmul.f32 %v105, 1.442695
  %v117 = vpow.pop %v116
  %v118 = vmul.f32 %v106, 1.442695
  %v119 = vpow.pop %v118
  %v120 = vmul.f32 %v107, 1.442695
  %v121 = vpow.pop %v120
  %v122 = vmul.f32 %v108, 1.442695
  %v123 = vpow.pop %v122
  %v124 = vmul.f32 %v109, 1.442695
  %v125 = vpow.pop %v124
  %v126 = vadd.f32 %v111, 1.0
  %v127 = vadd.f32 %v113, 1.0
  %v128 = vadd.f32 %v115, 1.0
  %v129 = vadd.f32 %v117, 1.0
  %v130 = vadd.f32 %v119, 1.0
  %v131 = vadd.f32 %v121, 1.0
  %v132 = vadd.f32 %v123, 1.0
  %v133 = vadd.f32 %v125, 1.0
  %v134 = vrcp.pop %v126
  %v135 = vmul.f32 %v126, %v134
  %v136 = vsub.f32 1.0, %v135
  %v137 = vmul.f32 %v134, %v136
  %v138 = vadd.f32 %v134, %v137
  %vm139 = vweird.f32 %v126
  %vm140 = vweird.f32 %v134
  %vm141 = vmor %vm139, %vm140
  %v142 = vsel %vm141, %v134, %v138
  %v143 = vand.u32 2147483647, %v126
  %vm144 = vcmp.eq.f32.partialorder %v143, 8.507059e+37
  %v145 = vand.u32 %v126, 2147483648
  %v146 = vor.u32 1.1754944e-38, %v145
  %v147 = vsel %vm144, %v146, %v142
  %v148 = vmul.f32 1.0, %v147
  %v149 = vrcp.pop %v127
  %v150 = vmul.f32 %v127, %v149
  %v151 = vsub.f32 1.0, %v150
  %v152 = vmul.f32 %v149, %v151
  %v153 = vadd.f32 %v149, %v152
  %vm154 = vweird.f32 %v127
  %vm155 = vweird.f32 %v149
  %vm156 = vmor %vm154, %vm155
  %v157 = vsel %vm156, %v149, %v153
  %v158 = vand.u32 2147483647, %v127
  %vm159 = vcmp.eq.f32.partialorder %v158, 8.507059e+37
  %v160 = vand.u32 %v127, 2147483648
  %v161 = vor.u32 1.1754944e-38, %v160
  %v162 = vsel %vm159, %v161, %v157
  %v163 = vmul.f32 1.0, %v162
  %v164 = vrcp.pop %v128
  %v165 = vmul.f32 %v128, %v164
  %v166 = vsub.f32 1.0, %v165
  %v167 = vmul.f32 %v164, %v166
  %v168 = vadd.f32 %v164, %v167
  %vm169 = vweird.f32 %v128
  %vm170 = vweird.f32 %v164
  %vm171 = vmor %vm169, %vm170
  %v172 = vsel %vm171, %v164, %v168
  %v173 = vand.u32 2147483647, %v128
  %vm174 = vcmp.eq.f32.partialorder %v173, 8.507059e+37
  %v175 = vand.u32 %v128, 2147483648
  %v176 = vor.u32 1.1754944e-38, %v175
  %v177 = vsel %vm174, %v176, %v172
  %v178 = vmul.f32 1.0, %v177
  %v179 = vrcp.pop %v129
  %v180 = vmul.f32 %v129, %v179
  %v181 = vsub.f32 1.0, %v180
  %v182 = vmul.f32 %v179, %v181
  %v183 = vadd.f32 %v179, %v182
  %vm184 = vweird.f32 %v129
  %vm185 = vweird.f32 %v179
  %vm186 = vmor %vm184, %vm185
  %v187 = vsel %vm186, %v179, %v183
  %v188 = vand.u32 2147483647, %v129
  %vm189 = vcmp.eq.f32.partialorder %v188, 8.507059e+37
  %v190 = vand.u32 %v129, 2147483648
  %v191 = vor.u32 1.1754944e-38, %v190
  %v192 = vsel %vm189, %v191, %v187
  %v193 = vmul.f32 1.0, %v192
  %v194 = vrcp.pop %v130
  %v195 = vmul.f32 %v130, %v194
  %v196 = vsub.f32 1.0, %v195
  %v197 = vmul.f32 %v194, %v196
  %v198 = vadd.f32 %v194, %v197
  %vm199 = vweird.f32 %v130
  %vm200 = vweird.f32 %v194
  %vm201 = vmor %vm199, %vm200
  %v202 = vsel %vm201, %v194, %v198
  %v203 = vand.u32 2147483647, %v130
  %vm204 = vcmp.eq.f32.partialorder %v203, 8.507059e+37
  %v205 = vand.u32 %v130, 2147483648
  %v206 = vor.u32 1.1754944e-38, %v205
  %v207 = vsel %vm204, %v206, %v202
  %v208 = vmul.f32 1.0, %v207
  %v209 = vrcp.pop %v131
  %v210 = vmul.f32 %v131, %v209
  %v211 = vsub.f32 1.0, %v210
  %v212 = vmul.f32 %v209, %v211
  %v213 = vadd.f32 %v209, %v212
  %vm214 = vweird.f32 %v131
  %vm215 = vweird.f32 %v209
  %vm216 = vmor %vm214, %vm215
  %v217 = vsel %vm216, %v209, %v213
  %v218 = vand.u32 2147483647, %v131
  %vm219 = vcmp.eq.f32.partialorder %v218, 8.507059e+37
  %v220 = vand.u32 %v131, 2147483648
  %v221 = vor.u32 1.1754944e-38, %v220
  %v222 = vsel %vm219, %v221, %v217
  %v223 = vmul.f32 1.0, %v222
  %v224 = vrcp.pop %v132
  %v225 = vmul.f32 %v132, %v224
  %v226 = vsub.f32 1.0, %v225
  %v227 = vmul.f32 %v224, %v226
  %v228 = vadd.f32 %v224, %v227
  %vm229 = vweird.f32 %v132
  %vm230 = vweird.f32 %v224
  %vm231 = vmor %vm229, %vm230
  %v232 = vsel %vm231, %v224, %v228
  %v233 = vand.u32 2147483647, %v132
  %vm234 = vcmp.eq.f32.partialorder %v233, 8.507059e+37
  %v235 = vand.u32 %v132, 2147483648
  %v236 = vor.u32 1.1754944e-38, %v235
  %v237 = vsel %vm234, %v236, %v232
  %v238 = vmul.f32 1.0, %v237
  %v239 = vrcp.pop %v133
  %v240 = vmul.f32 %v133, %v239
  %v241 = vsub.f32 1.0, %v240
  %v242 = vmul.f32 %v239, %v241
  %v243 = vadd.f32 %v239, %v242
  %vm244 = vweird.f32 %v133
  %vm245 = vweird.f32 %v239
  %vm246 = vmor %vm244, %vm245
  %v247 = vsel %vm246, %v239, %v243
  %v248 = vand.u32 2147483647, %v133
  %vm249 = vcmp.eq.f32.partialorder %v248, 8.507059e+37
  %v250 = vand.u32 %v133, 2147483648
  %v251 = vor.u32 1.1754944e-38, %v250
  %v252 = vsel %vm249, %v251, %v247
  %v253 = vmul.f32 1.0, %v252
  %262 = vrot.lane.b32.xlu0 %v148, 96
  %v263 = vpop.permute.xlu0 %262
  %264 = vrot.lane.b32.xlu0 %v163, 96
  %v265 = vpop.permute.xlu0 %264
  %266 = vrot.lane.b32.xlu0 %v178, 96
  %v267 = vpop.permute.xlu0 %266
  %268 = vrot.lane.b32.xlu0 %v193, 96
  %v269 = vpop.permute.xlu0 %268
  %270 = vrot.lane.b32.xlu0 %v208, 96
  %v271 = vpop.permute.xlu0 %270
  %272 = vrot.lane.b32.xlu0 %v223, 96
  %v273 = vpop.permute.xlu0 %272
  %274 = vrot.lane.b32.xlu0 %v238, 96
  %v275 = vpop.permute.xlu0 %274
  %276 = vrot.lane.b32.xlu0 %v253, 96
  %v277 = vpop.permute.xlu0 %276
  %286 = vst.msk [vmem:[#allocation3] sm:$0xff] %vm36, %v263
  %287 = vst.msk [vmem:[#allocation3 + $0x8] sm:$0xff] %vm36, %v265
  %288 = vst.msk [vmem:[#allocation3 + $0x10] sm:$0xff] %vm36, %v267
  %289 = vst.msk [vmem:[#allocation3 + $0x18] sm:$0xff] %vm36, %v269
  %290 = vst.msk [vmem:[#allocation3 + $0x20] sm:$0xff] %vm36, %v271
  %291 = vst.msk [vmem:[#allocation3 + $0x28] sm:$0xff] %vm36, %v273
  %292 = vst.msk [vmem:[#allocation3 + $0x30] sm:$0xff] %vm36, %v275
  %293 = vst.msk [vmem:[#allocation3 + $0x38] sm:$0xff] %vm36, %v277
  %v294 = vsub.f32 1.0, %v148
  %v295 = vsub.f32 1.0, %v163
  %v296 = vsub.f32 1.0, %v178
  %v297 = vsub.f32 1.0, %v193
  %v298 = vsub.f32 1.0, %v208
  %v299 = vsub.f32 1.0, %v223
  %v300 = vsub.f32 1.0, %v238
  %v301 = vsub.f32 1.0, %v253
  %310 = vrot.lane.b32.xlu0 %v79, 32
  %v311 = vpop.permute.xlu0 %310
  %312 = vrot.lane.b32.xlu0 %v82, 32
  %v313 = vpop.permute.xlu0 %312
  %314 = vrot.lane.b32.xlu0 %v85, 32
  %v315 = vpop.permute.xlu0 %314
  %316 = vrot.lane.b32.xlu0 %v88, 32
  %v317 = vpop.permute.xlu0 %316
  %318 = vrot.lane.b32.xlu0 %v91, 32
  %v319 = vpop.permute.xlu0 %318
  %320 = vrot.lane.b32.xlu0 %v94, 32
  %v321 = vpop.permute.xlu0 %320
  %322 = vrot.lane.b32.xlu0 %v97, 32
  %v323 = vpop.permute.xlu0 %322
  %324 = vrot.lane.b32.xlu0 %v100, 32
  %v325 = vpop.permute.xlu0 %324
  %v334 = vmul.f32 %v294, %v311
  %v335 = vmul.f32 %v295, %v313
  %v336 = vmul.f32 %v296, %v315
  %v337 = vmul.f32 %v297, %v317
  %v338 = vmul.f32 %v298, %v319
  %v339 = vmul.f32 %v299, %v321
  %v340 = vmul.f32 %v300, %v323
  %v341 = vmul.f32 %v301, %v325
  %350 = vrot.lane.b32.xlu0 %v334, 96
  %v351 = vpop.permute.xlu0 %350
  %352 = vrot.lane.b32.xlu0 %v335, 96
  %v353 = vpop.permute.xlu0 %352
  %354 = vrot.lane.b32.xlu0 %v336, 96
  %v355 = vpop.permute.xlu0 %354
  %356 = vrot.lane.b32.xlu0 %v337, 96
  %v357 = vpop.permute.xlu0 %356
  %358 = vrot.lane.b32.xlu0 %v338, 96
  %v359 = vpop.permute.xlu0 %358
  %360 = vrot.lane.b32.xlu0 %v339, 96
  %v361 = vpop.permute.xlu0 %360
  %362 = vrot.lane.b32.xlu0 %v340, 96
  %v363 = vpop.permute.xlu0 %362
  %364 = vrot.lane.b32.xlu0 %v341, 96
  %v365 = vpop.permute.xlu0 %364
  %374 = vst.msk [vmem:[#allocation4] sm:$0xff] %vm36, %v351
  %375 = vst.msk [vmem:[#allocation4 + $0x8] sm:$0xff] %vm36, %v353
  %376 = vst.msk [vmem:[#allocation4 + $0x10] sm:$0xff] %vm36, %v355
  %377 = vst.msk [vmem:[#allocation4 + $0x18] sm:$0xff] %vm36, %v357
  %378 = vst.msk [vmem:[#allocation4 + $0x20] sm:$0xff] %vm36, %v359
  %379 = vst.msk [vmem:[#allocation4 + $0x28] sm:$0xff] %vm36, %v361
  %380 = vst.msk [vmem:[#allocation4 + $0x30] sm:$0xff] %vm36, %v363
  %381 = vst.msk [vmem:[#allocation4 + $0x38] sm:$0xff] %vm36, %v365
  %382 = vrot.lane.b32.xlu0 %v148, 64
  %v383 = vpop.permute.xlu0 %382
  %384 = vrot.lane.b32.xlu0 %v163, 64
  %v385 = vpop.permute.xlu0 %384
  %386 = vrot.lane.b32.xlu0 %v178, 64
  %v387 = vpop.permute.xlu0 %386
  %388 = vrot.lane.b32.xlu0 %v193, 64
  %v389 = vpop.permute.xlu0 %388
  %390 = vrot.lane.b32.xlu0 %v208, 64
  %v391 = vpop.permute.xlu0 %390
  %392 = vrot.lane.b32.xlu0 %v223, 64
  %v393 = vpop.permute.xlu0 %392
  %394 = vrot.lane.b32.xlu0 %v238, 64
  %v395 = vpop.permute.xlu0 %394
  %396 = vrot.lane.b32.xlu0 %v253, 64
  %v397 = vpop.permute.xlu0 %396
  %406 = vst.msk [vmem:[#allocation5] sm:$0xff] %vm36, %v383
  %407 = vst.msk [vmem:[#allocation5 + $0x8] sm:$0xff] %vm36, %v385
  %408 = vst.msk [vmem:[#allocation5 + $0x10] sm:$0xff] %vm36, %v387
  %409 = vst.msk [vmem:[#allocation5 + $0x18] sm:$0xff] %vm36, %v389
  %410 = vst.msk [vmem:[#allocation5 + $0x20] sm:$0xff] %vm36, %v391
  %411 = vst.msk [vmem:[#allocation5 + $0x28] sm:$0xff] %vm36, %v393
  %412 = vst.msk [vmem:[#allocation5 + $0x30] sm:$0xff] %vm36, %v395
  %413 = vst.msk [vmem:[#allocation5 + $0x38] sm:$0xff] %vm36, %v397
  %414 = vrot.lane.b32.xlu0 %v79, 96
  %v415 = vpop.permute.xlu0 %414
  %416 = vrot.lane.b32.xlu0 %v82, 96
  %v417 = vpop.permute.xlu0 %416
  %418 = vrot.lane.b32.xlu0 %v85, 96
  %v419 = vpop.permute.xlu0 %418
  %420 = vrot.lane.b32.xlu0 %v88, 96
  %v421 = vpop.permute.xlu0 %420
  %422 = vrot.lane.b32.xlu0 %v91, 96
  %v423 = vpop.permute.xlu0 %422
  %424 = vrot.lane.b32.xlu0 %v94, 96
  %v425 = vpop.permute.xlu0 %424
  %426 = vrot.lane.b32.xlu0 %v97, 96
  %v427 = vpop.permute.xlu0 %426
  %428 = vrot.lane.b32.xlu0 %v100, 96
  %v429 = vpop.permute.xlu0 %428
  %v438 = vmul.f32 %v294, %v415
  %v439 = vmul.f32 %v295, %v417
  %v440 = vmul.f32 %v296, %v419
  %v441 = vmul.f32 %v297, %v421
  %v442 = vmul.f32 %v298, %v423
  %v443 = vmul.f32 %v299, %v425
  %v444 = vmul.f32 %v300, %v427
  %v445 = vmul.f32 %v301, %v429
  %454 = vrot.lane.b32.xlu0 %v438, 64
  %v455 = vpop.permute.xlu0 %454
  %456 = vrot.lane.b32.xlu0 %v439, 64
  %v457 = vpop.permute.xlu0 %456
  %458 = vrot.lane.b32.xlu0 %v440, 64
  %v459 = vpop.permute.xlu0 %458
  %460 = vrot.lane.b32.xlu0 %v441, 64
  %v461 = vpop.permute.xlu0 %460
  %462 = vrot.lane.b32.xlu0 %v442, 64
  %v463 = vpop.permute.xlu0 %462
  %464 = vrot.lane.b32.xlu0 %v443, 64
  %v465 = vpop.permute.xlu0 %464
  %466 = vrot.lane.b32.xlu0 %v444, 64
  %v467 = vpop.permute.xlu0 %466
  %468 = vrot.lane.b32.xlu0 %v445, 64
  %v469 = vpop.permute.xlu0 %468
  %478 = vst.msk [vmem:[#allocation6] sm:$0xff] %vm36, %v455
  %479 = vst.msk [vmem:[#allocation6 + $0x8] sm:$0xff] %vm36, %v457
  %480 = vst.msk [vmem:[#allocation6 + $0x10] sm:$0xff] %vm36, %v459
  %481 = vst.msk [vmem:[#allocation6 + $0x18] sm:$0xff] %vm36, %v461
  %482 = vst.msk [vmem:[#allocation6 + $0x20] sm:$0xff] %vm36, %v463
  %483 = vst.msk [vmem:[#allocation6 + $0x28] sm:$0xff] %vm36, %v465
  %484 = vst.msk [vmem:[#allocation6 + $0x30] sm:$0xff] %vm36, %v467
  %485 = vst.msk [vmem:[#allocation6 + $0x38] sm:$0xff] %vm36, %v469
  %v486 = vld [vmem:[#allocation2] sm:$0xff]
  %v487 = vld [vmem:[#allocation3] sm:$0xff]
  %v488 = vmul.f32 %v487, %v486
  %v489 = vld [vmem:[#allocation4] sm:$0xff]
  %v490 = vadd.f32 %v488, %v489
  %v491 = vld [vmem:[#allocation5] sm:$0xff]
  %v492 = vtanh.pop %v490
  %v493 = vmul.f32 %v491, %v492
  %v494 = vld [vmem:[#allocation6] sm:$0xff]
  %v495 = vadd.f32 %v493, %v494
  %496 = vst.msk [vmem:[%s3] sm:$0xff] %vm36, %v495
  %s497 = scalar_lea.vmem [#allocation3], 8
  %v498 = vld [vmem:[%s497] sm:$0xff]
  %v499 = vmul.f32 %v498, %v490
  %s500 = scalar_lea.vmem [#allocation4], 8
  %v501 = vld [vmem:[%s500] sm:$0xff]
  %v502 = vadd.f32 %v499, %v501
  %s503 = scalar_lea.vmem [#allocation5], 8
  %v504 = vld [vmem:[%s503] sm:$0xff]
  %v505 = vtanh.pop %v502
  %v506 = vmul.f32 %v504, %v505
  %s507 = scalar_lea.vmem [#allocation6], 8
  %v508 = vld [vmem:[%s507] sm:$0xff]
  %v509 = vadd.f32 %v506, %v508
  %s510 = scalar_lea.vmem %s3, 8
  %511 = vst.msk [vmem:[%s510] sm:$0xff] %vm36, %v509
  %s512 = scalar_lea.vmem [#allocation3], 16
  %v513 = vld [vmem:[%s512] sm:$0xff]
  %v514 = vmul.f32 %v513, %v502
  %s515 = scalar_lea.vmem [#allocation4], 16
  %v516 = vld [vmem:[%s515] sm:$0xff]
  %v517 = vadd.f32 %v514, %v516
  %s518 = scalar_lea.vmem [#allocation5], 16
  %v519 = vld [vmem:[%s518] sm:$0xff]
  %v520 = vtanh.pop %v517
  %v521 = vmul.f32 %v519, %v520
  %s522 = scalar_lea.vmem [#allocation6], 16
  %v523 = vld [vmem:[%s522] sm:$0xff]
  %v524 = vadd.f32 %v521, %v523
  %s525 = scalar_lea.vmem %s3, 16
  %526 = vst.msk [vmem:[%s525] sm:$0xff] %vm36, %v524
  %s527 = scalar_lea.vmem [#allocation3], 24
  %v528 = vld [vmem:[%s527] sm:$0xff]
  %v529 = vmul.f32 %v528, %v517
  %s530 = scalar_lea.vmem [#allocation4], 24
  %v531 = vld [vmem:[%s530] sm:$0xff]
  %v532 = vadd.f32 %v529, %v531
  %s533 = scalar_lea.vmem [#allocation5], 24
  %v534 = vld [vmem:[%s533] sm:$0xff]
  %v535 = vtanh.pop %v532
  %v536 = vmul.f32 %v534, %v535
  %s537 = scalar_lea.vmem [#allocation6], 24
  %v538 = vld [vmem:[%s537] sm:$0xff]
  %v539 = vadd.f32 %v536, %v538
  %s540 = scalar_lea.vmem %s3, 24
  %541 = vst.msk [vmem:[%s540] sm:$0xff] %vm36, %v539
  %s542 = scalar_lea.vmem [#allocation3], 32
  %v543 = vld [vmem:[%s542] sm:$0xff]
  %v544 = vmul.f32 %v543, %v532
  %s545 = scalar_lea.vmem [#allocation4], 32
  %v546 = vld [vmem:[%s545] sm:$0xff]
  %v547 = vadd.f32 %v544, %v546
  %s548 = scalar_lea.vmem [#allocation5], 32
  %v549 = vld [vmem:[%s548] sm:$0xff]
  %v550 = vtanh.pop %v547
  %v551 = vmul.f32 %v549, %v550
  %s552 = scalar_lea.vmem [#allocation6], 32
  %v553 = vld [vmem:[%s552] sm:$0xff]
  %v554 = vadd.f32 %v551, %v553
  %s555 = scalar_lea.vmem %s3, 32
  %556 = vst.msk [vmem:[%s555] sm:$0xff] %vm36, %v554
  %s557 = scalar_lea.vmem [#allocation3], 40
  %v558 = vld [vmem:[%s557] sm:$0xff]
  %v559 = vmul.f32 %v558, %v547
  %s560 = scalar_lea.vmem [#allocation4], 40
  %v561 = vld [vmem:[%s560] sm:$0xff]
  %v562 = vadd.f32 %v559, %v561
  %s563 = scalar_lea.vmem [#allocation5], 40
  %v564 = vld [vmem:[%s563] sm:$0xff]
  %v565 = vtanh.pop %v562
  %v566 = vmul.f32 %v564, %v565
  %s567 = scalar_lea.vmem [#allocation6], 40
  %v568 = vld [vmem:[%s567] sm:$0xff]
  %v569 = vadd.f32 %v566, %v568
  %s570 = scalar_lea.vmem %s3, 40
  %571 = vst.msk [vmem:[%s570] sm:$0xff] %vm36, %v569
  %s572 = scalar_lea.vmem [#allocation3], 48
  %v573 = vld [vmem:[%s572] sm:$0xff]
  %v574 = vmul.f32 %v573, %v562
  %s575 = scalar_lea.vmem [#allocation4], 48
  %v576 = vld [vmem:[%s575] sm:$0xff]
  %v577 = vadd.f32 %v574, %v576
  %s578 = scalar_lea.vmem [#allocation5], 48
  %v579 = vld [vmem:[%s578] sm:$0xff]
  %v580 = vtanh.pop %v577
  %v581 = vmul.f32 %v579, %v580
  %s582 = scalar_lea.vmem [#allocation6], 48
  %v583 = vld [vmem:[%s582] sm:$0xff]
  %v584 = vadd.f32 %v581, %v583
  %s585 = scalar_lea.vmem %s3, 48
  %586 = vst.msk [vmem:[%s585] sm:$0xff] %vm36, %v584
  %s587 = scalar_lea.vmem [#allocation3], 56
  %v588 = vld [vmem:[%s587] sm:$0xff]
  %v589 = vmul.f32 %v588, %v577
  %s590 = scalar_lea.vmem [#allocation4], 56
  %v591 = vld [vmem:[%s590] sm:$0xff]
  %v592 = vadd.f32 %v589, %v591
  %s593 = scalar_lea.vmem [#allocation5], 56
  %v594 = vld [vmem:[%s593] sm:$0xff]
  %v595 = vtanh.pop %v592
  %v596 = vmul.f32 %v594, %v595
  %s597 = scalar_lea.vmem [#allocation6], 56
  %v598 = vld [vmem:[%s597] sm:$0xff]
  %v599 = vadd.f32 %v596, %v598
  %s600 = scalar_lea.vmem %s3, 56
  %601 = vst.msk [vmem:[%s600] sm:$0xff] %vm36, %v599
  %602 = vst.msk [vmem:[#allocation2] sm:$0xff] %vm36, %v592
  // Predicated region
  $region18: #{song2hum_forward.3} parent=0 // pred_check
    _
  $region19: #{song2hum_forward.3} parent=0 // pred_check_branch
    %604 = sbr.rel (0) target = $region21
  $region20: #{song2hum_forward.3} parent=0 // pred_region
    _
  $region21: #{song2hum_forward.3} parent=0 // pred_fallthru
    _
  // Predicated region
  $region22: #{song2hum_forward.3} parent=0 // pred_check
    _
  $region23: #{song2hum_forward.3} parent=0 // pred_check_branch
    %606 = sbr.rel (0) target = $region25
  $region24: #{song2hum_forward.3} parent=0 // pred_region
    _
  $region25: #{song2hum_forward.3} parent=0 // pred_fallthru
    _

// kernel: song2hum_forward.2
$region0: #{song2hum_forward.2}
  #allocation0 [shape = 'u32[]', space=smem, size = 0x4, offset = 0x4, fixed_abs, tag = 'smem constant byte address 0x4 - core index']
  #allocation1 [shape = 'u32[72,128]{1,0:T(1,128)}', space=vmem, size = 0x9000, scoped, tag = 'internal scratch']
  #allocation2 [shape = 'f32[8,32]{1,0:T(8,128)}', space=vmem, size = 0x1000, scoped, tag = 'scratch operand']
  #allocation3 [shape = 'f32[64,32]{1,0:T(8,128)}', space=vmem, size = 0x8000, scoped, tag = 'scratch operand']
  #allocation4 [shape = 'f32[64,32]{1,0:T(8,128)}', space=vmem, size = 0x8000, scoped, tag = 'scratch operand']
  #allocation5 [shape = 'f32[64,32]{1,0:T(8,128)}', space=vmem, size = 0x8000, scoped, tag = 'scratch operand']
  #allocation6 [shape = 'f32[64,32]{1,0:T(8,128)}', space=vmem, size = 0x8000, scoped, tag = 'scratch operand']
  %s0 = inlined_call_operand.vmem [shape: f32[64,16], index: 0, kind: input, shape index: {}]
  %s1 = inlined_call_operand.vmem [shape: f32[16,128], index: 1, kind: input, shape index: {}]
  %s2 = inlined_call_operand.vmem [shape: f32[1,128], index: 2, kind: input, shape index: {}]
  %s3 = inlined_call_operand.vmem [shape: f32[8,8,32], index: 3, kind: output, shape index: {}]
  %s4 = sld [smem:[#allocation0]]
  $region26: #{song2hum_forward.2} parent=0
    _
  %s6 = ssub.s32 1, %s4
  %s7 = scalar_select 0, %s6, %s4
  // Predicated region
  $region2: #{song2hum_forward.2} parent=0 // pred_check
    _
  $region3: #{song2hum_forward.2} parent=0 // pred_check_branch
    %9 = sbr.rel (0) target = $region5
  $region4: #{song2hum_forward.2} parent=0 // pred_region
    _
  $region5: #{song2hum_forward.2} parent=0 // pred_fallthru
    _
  // Predicated region
  $region6: #{song2hum_forward.2} parent=0 // pred_check
    _
  $region7: #{song2hum_forward.2} parent=0 // pred_check_branch
    %11 = sbr.rel (0) target = $region9
  $region8: #{song2hum_forward.2} parent=0 // pred_region
    _
  $region9: #{song2hum_forward.2} parent=0 // pred_fallthru
    _
  // Predicated region
  $region10: #{song2hum_forward.2} parent=0 // pred_check
    _
  $region11: #{song2hum_forward.2} parent=0 // pred_check_branch
    %13 = sbr.rel (0) target = $region13
  $region12: #{song2hum_forward.2} parent=0 // pred_region
    _
  $region13: #{song2hum_forward.2} parent=0 // pred_fallthru
    _
  %p14 = scmp.eq.s32.totalorder 0, 0
  // Predicated region
  $region14: #{song2hum_forward.2} parent=0 // pred_check
    %p15 = pneg %p14
  $region15: #{song2hum_forward.2} parent=0 // pred_check_branch
    %17 = sbr.rel (%p15) target = $region17
  $region16: #{song2hum_forward.2} parent=0 // pred_region
    %vm18 = vcmask 261120
    %19 = vst.msk [vmem:[#allocation2] sm:$0xff] %vm18, 0.0
  $region17: #{song2hum_forward.2} parent=0 // pred_fallthru
    _
  %v20 = vld [vmem:[%s0] sm:$0xff]
  %v21 = vld [vmem:[%s0 + $0x8] sm:$0xff]
  %v22 = vld [vmem:[%s0 + $0x10] sm:$0xff]
  %v23 = vld [vmem:[%s0 + $0x18] sm:$0xff]
  %v24 = vld [vmem:[%s0 + $0x20] sm:$0xff]
  %v25 = vld [vmem:[%s0 + $0x28] sm:$0xff]
  %v26 = vld [vmem:[%s0 + $0x30] sm:$0xff]
  %v27 = vld [vmem:[%s0 + $0x38] sm:$0xff]
  %v28 = vld [vmem:[%s1] sm:$0xff]
  %v29 = vld [vmem:[%s1 + $0x8] sm:$0xff]
  %v30 = vld [vmem:[%s2] sm:$0x1]
  %v32 = vperm.slane %v30, 0
  %vm34 = vcmask 130048
  %v36 = vsel %vm34, %v20, 0
  %v39 = vsel %vm34, %v21, 0
  %v42 = vsel %vm34, %v22, 0
  %v45 = vsel %vm34, %v23, 0
  %v48 = vsel %vm34, %v24, 0
  %v51 = vsel %vm34, %v25, 0
  %v54 = vsel %vm34, %v26, 0
  %v57 = vsel %vm34, %v27, 0
  %59 = vmatpush.msra.mxu0 0.0
  %60 = vmatpush.msra.mxu0 0.0
  %61 = vmatpush.msra.mxu0 0.0
  %62 = vmatpush.msra.mxu0 0.0
  %63 = vmatpush.msra.mxu0 0.0
  %64 = vmatpush.msra.mxu0 0.0
  %65 = vmatpush.msra.mxu0 0.0
  %66 = vmatpush.msra.mxu0 0.0
  %67 = vmatpush.msra.mxu0 0.0
  %68 = vmatpush.msra.mxu0 0.0
  %69 = vmatpush.msra.mxu0 0.0
  %70 = vmatpush.msra.mxu0 0.0
  %71 = vmatpush.msra.mxu0 0.0
  %72 = vmatpush.msra.mxu0 0.0
  %73 = vmatpush.msra.mxu0 %v29
  %74 = vmatpush.msra.mxu0 %v28
  %75 = vmatmul.f32.gmra.mxu0 %v36
  %v76 = vpop.f32.mrf.mxu0
  %v77 = vadd.f32 %v32, %v76
  %78 = vmatmul.f32.gmra.mxu0 %v39
  %v79 = vpop.f32.mrf.mxu0
  %v80 = vadd.f32 %v32, %v79
  %81 = vmatmul.f32.gmra.mxu0 %v42
  %v82 = vpop.f32.mrf.mxu0
  %v83 = vadd.f32 %v32, %v82
  %84 = vmatmul.f32.gmra.mxu0 %v45
  %v85 = vpop.f32.mrf.mxu0
  %v86 = vadd.f32 %v32, %v85
  %87 = vmatmul.f32.gmra.mxu0 %v48
  %v88 = vpop.f32.mrf.mxu0
  %v89 = vadd.f32 %v32, %v88
  %90 = vmatmul.f32.gmra.mxu0 %v51
  %v91 = vpop.f32.mrf.mxu0
  %v92 = vadd.f32 %v32, %v91
  %93 = vmatmul.f32.gmra.mxu0 %v54
  %v94 = vpop.f32.mrf.mxu0
  %v95 = vadd.f32 %v32, %v94
  %96 = vmatmul.f32.gmra.mxu0 %v57
  %v97 = vpop.f32.mrf.mxu0
  %v98 = vadd.f32 %v32, %v97
  %99 = vdwg.mxu0
  %v100 = vxor.u32 %v77, 2147483648
  %v101 = vxor.u32 %v80, 2147483648
  %v102 = vxor.u32 %v83, 2147483648
  %v103 = vxor.u32 %v86, 2147483648
  %v104 = vxor.u32 %v89, 2147483648
  %v105 = vxor.u32 %v92, 2147483648
  %v106 = vxor.u32 %v95, 2147483648
  %v107 = vxor.u32 %v98, 2147483648
  %v108 = vmul.f32 %v100, 1.442695
  %v109 = vpow.pop %v108
  %v110 = vmul.f32 %v101, 1.442695
  %v111 = vpow.pop %v110
  %v112 = vmul.f32 %v102, 1.442695
  %v113 = vpow.pop %v112
  %v114 = vmul.f32 %v103, 1.442695
  %v115 = vpow.pop %v114
  %v116 = vmul.f32 %v104, 1.442695
  %v117 = vpow.pop %v116
  %v118 = vmul.f32 %v105, 1.442695
  %v119 = vpow.pop %v118
  %v120 = vmul.f32 %v106, 1.442695
  %v121 = vpow.pop %v120
  %v122 = vmul.f32 %v107, 1.442695
  %v123 = vpow.pop %v122
  %v124 = vadd.f32 %v109, 1.0
  %v125 = vadd.f32 %v111, 1.0
  %v126 = vadd.f32 %v113, 1.0
  %v127 = vadd.f32 %v115, 1.0
  %v128 = vadd.f32 %v117, 1.0
  %v129 = vadd.f32 %v119, 1.0
  %v130 = vadd.f32 %v121, 1.0
  %v131 = vadd.f32 %v123, 1.0
  %v132 = vrcp.pop %v124
  %v133 = vmul.f32 %v124, %v132
  %v134 = vsub.f32 1.0, %v133
  %v135 = vmul.f32 %v132, %v134
  %v136 = vadd.f32 %v132, %v135
  %vm137 = vweird.f32 %v124
  %vm138 = vweird.f32 %v132
  %vm139 = vmor %vm137, %vm138
  %v140 = vsel %vm139, %v132, %v136
  %v141 = vand.u32 2147483647, %v124
  %vm142 = vcmp.eq.f32.partialorder %v141, 8.507059e+37
  %v143 = vand.u32 %v124, 2147483648
  %v144 = vor.u32 1.1754944e-38, %v143
  %v145 = vsel %vm142, %v144, %v140
  %v146 = vmul.f32 1.0, %v145
  %v147 = vrcp.pop %v125
  %v148 = vmul.f32 %v125, %v147
  %v149 = vsub.f32 1.0, %v148
  %v150 = vmul.f32 %v147, %v149
  %v151 = vadd.f32 %v147, %v150
  %vm152 = vweird.f32 %v125
  %vm153 = vweird.f32 %v147
  %vm154 = vmor %vm152, %vm153
  %v155 = vsel %vm154, %v147, %v151
  %v156 = vand.u32 2147483647, %v125
  %vm157 = vcmp.eq.f32.partialorder %v156, 8.507059e+37
  %v158 = vand.u32 %v125, 2147483648
  %v159 = vor.u32 1.1754944e-38, %v158
  %v160 = vsel %vm157, %v159, %v155
  %v161 = vmul.f32 1.0, %v160
  %v162 = vrcp.pop %v126
  %v163 = vmul.f32 %v126, %v162
  %v164 = vsub.f32 1.0, %v163
  %v165 = vmul.f32 %v162, %v164
  %v166 = vadd.f32 %v162, %v165
  %vm167 = vweird.f32 %v126
  %vm168 = vweird.f32 %v162
  %vm169 = vmor %vm167, %vm168
  %v170 = vsel %vm169, %v162, %v166
  %v171 = vand.u32 2147483647, %v126
  %vm172 = vcmp.eq.f32.partialorder %v171, 8.507059e+37
  %v173 = vand.u32 %v126, 2147483648
  %v174 = vor.u32 1.1754944e-38, %v173
  %v175 = vsel %vm172, %v174, %v170
  %v176 = vmul.f32 1.0, %v175
  %v177 = vrcp.pop %v127
  %v178 = vmul.f32 %v127, %v177
  %v179 = vsub.f32 1.0, %v178
  %v180 = vmul.f32 %v177, %v179
  %v181 = vadd.f32 %v177, %v180
  %vm182 = vweird.f32 %v127
  %vm183 = vweird.f32 %v177
  %vm184 = vmor %vm182, %vm183
  %v185 = vsel %vm184, %v177, %v181
  %v186 = vand.u32 2147483647, %v127
  %vm187 = vcmp.eq.f32.partialorder %v186, 8.507059e+37
  %v188 = vand.u32 %v127, 2147483648
  %v189 = vor.u32 1.1754944e-38, %v188
  %v190 = vsel %vm187, %v189, %v185
  %v191 = vmul.f32 1.0, %v190
  %v192 = vrcp.pop %v128
  %v193 = vmul.f32 %v128, %v192
  %v194 = vsub.f32 1.0, %v193
  %v195 = vmul.f32 %v192, %v194
  %v196 = vadd.f32 %v192, %v195
  %vm197 = vweird.f32 %v128
  %vm198 = vweird.f32 %v192
  %vm199 = vmor %vm197, %vm198
  %v200 = vsel %vm199, %v192, %v196
  %v201 = vand.u32 2147483647, %v128
  %vm202 = vcmp.eq.f32.partialorder %v201, 8.507059e+37
  %v203 = vand.u32 %v128, 2147483648
  %v204 = vor.u32 1.1754944e-38, %v203
  %v205 = vsel %vm202, %v204, %v200
  %v206 = vmul.f32 1.0, %v205
  %v207 = vrcp.pop %v129
  %v208 = vmul.f32 %v129, %v207
  %v209 = vsub.f32 1.0, %v208
  %v210 = vmul.f32 %v207, %v209
  %v211 = vadd.f32 %v207, %v210
  %vm212 = vweird.f32 %v129
  %vm213 = vweird.f32 %v207
  %vm214 = vmor %vm212, %vm213
  %v215 = vsel %vm214, %v207, %v211
  %v216 = vand.u32 2147483647, %v129
  %vm217 = vcmp.eq.f32.partialorder %v216, 8.507059e+37
  %v218 = vand.u32 %v129, 2147483648
  %v219 = vor.u32 1.1754944e-38, %v218
  %v220 = vsel %vm217, %v219, %v215
  %v221 = vmul.f32 1.0, %v220
  %v222 = vrcp.pop %v130
  %v223 = vmul.f32 %v130, %v222
  %v224 = vsub.f32 1.0, %v223
  %v225 = vmul.f32 %v222, %v224
  %v226 = vadd.f32 %v222, %v225
  %vm227 = vweird.f32 %v130
  %vm228 = vweird.f32 %v222
  %vm229 = vmor %vm227, %vm228
  %v230 = vsel %vm229, %v222, %v226
  %v231 = vand.u32 2147483647, %v130
  %vm232 = vcmp.eq.f32.partialorder %v231, 8.507059e+37
  %v233 = vand.u32 %v130, 2147483648
  %v234 = vor.u32 1.1754944e-38, %v233
  %v235 = vsel %vm232, %v234, %v230
  %v236 = vmul.f32 1.0, %v235
  %v237 = vrcp.pop %v131
  %v238 = vmul.f32 %v131, %v237
  %v239 = vsub.f32 1.0, %v238
  %v240 = vmul.f32 %v237, %v239
  %v241 = vadd.f32 %v237, %v240
  %vm242 = vweird.f32 %v131
  %vm243 = vweird.f32 %v237
  %vm244 = vmor %vm242, %vm243
  %v245 = vsel %vm244, %v237, %v241
  %v246 = vand.u32 2147483647, %v131
  %vm247 = vcmp.eq.f32.partialorder %v246, 8.507059e+37
  %v248 = vand.u32 %v131, 2147483648
  %v249 = vor.u32 1.1754944e-38, %v248
  %v250 = vsel %vm247, %v249, %v245
  %v251 = vmul.f32 1.0, %v250
  %260 = vrot.lane.b32.xlu0 %v146, 96
  %v261 = vpop.permute.xlu0 %260
  %262 = vrot.lane.b32.xlu0 %v161, 96
  %v263 = vpop.permute.xlu0 %262
  %264 = vrot.lane.b32.xlu0 %v176, 96
  %v265 = vpop.permute.xlu0 %264
  %266 = vrot.lane.b32.xlu0 %v191, 96
  %v267 = vpop.permute.xlu0 %266
  %268 = vrot.lane.b32.xlu0 %v206, 96
  %v269 = vpop.permute.xlu0 %268
  %270 = vrot.lane.b32.xlu0 %v221, 96
  %v271 = vpop.permute.xlu0 %270
  %272 = vrot.lane.b32.xlu0 %v236, 96
  %v273 = vpop.permute.xlu0 %272
  %274 = vrot.lane.b32.xlu0 %v251, 96
  %v275 = vpop.permute.xlu0 %274
  %vm284 = vcmask 261120
  %285 = vst.msk [vmem:[#allocation3] sm:$0xff] %vm284, %v261
  %286 = vst.msk [vmem:[#allocation3 + $0x8] sm:$0xff] %vm284, %v263
  %287 = vst.msk [vmem:[#allocation3 + $0x10] sm:$0xff] %vm284, %v265
  %288 = vst.msk [vmem:[#allocation3 + $0x18] sm:$0xff] %vm284, %v267
  %289 = vst.msk [vmem:[#allocation3 + $0x20] sm:$0xff] %vm284, %v269
  %290 = vst.msk [vmem:[#allocation3 + $0x28] sm:$0xff] %vm284, %v271
  %291 = vst.msk [vmem:[#allocation3 + $0x30] sm:$0xff] %vm284, %v273
  %292 = vst.msk [vmem:[#allocation3 + $0x38] sm:$0xff] %vm284, %v275
  %v293 = vsub.f32 1.0, %v146
  %v294 = vsub.f32 1.0, %v161
  %v295 = vsub.f32 1.0, %v176
  %v296 = vsub.f32 1.0, %v191
  %v297 = vsub.f32 1.0, %v206
  %v298 = vsub.f32 1.0, %v221
  %v299 = vsub.f32 1.0, %v236
  %v300 = vsub.f32 1.0, %v251
  %309 = vrot.lane.b32.xlu0 %v77, 32
  %v310 = vpop.permute.xlu0 %309
  %311 = vrot.lane.b32.xlu0 %v80, 32
  %v312 = vpop.permute.xlu0 %311
  %313 = vrot.lane.b32.xlu0 %v83, 32
  %v314 = vpop.permute.xlu0 %313
  %315 = vrot.lane.b32.xlu0 %v86, 32
  %v316 = vpop.permute.xlu0 %315
  %317 = vrot.lane.b32.xlu0 %v89, 32
  %v318 = vpop.permute.xlu0 %317
  %319 = vrot.lane.b32.xlu0 %v92, 32
  %v320 = vpop.permute.xlu0 %319
  %321 = vrot.lane.b32.xlu0 %v95, 32
  %v322 = vpop.permute.xlu0 %321
  %323 = vrot.lane.b32.xlu0 %v98, 32
  %v324 = vpop.permute.xlu0 %323
  %v333 = vmul.f32 %v293, %v310
  %v334 = vmul.f32 %v294, %v312
  %v335 = vmul.f32 %v295, %v314
  %v336 = vmul.f32 %v296, %v316
  %v337 = vmul.f32 %v297, %v318
  %v338 = vmul.f32 %v298, %v320
  %v339 = vmul.f32 %v299, %v322
  %v340 = vmul.f32 %v300, %v324
  %349 = vrot.lane.b32.xlu0 %v333, 96
  %v350 = vpop.permute.xlu0 %349
  %351 = vrot.lane.b32.xlu0 %v334, 96
  %v352 = vpop.permute.xlu0 %351
  %353 = vrot.lane.b32.xlu0 %v335, 96
  %v354 = vpop.permute.xlu0 %353
  %355 = vrot.lane.b32.xlu0 %v336, 96
  %v356 = vpop.permute.xlu0 %355
  %357 = vrot.lane.b32.xlu0 %v337, 96
  %v358 = vpop.permute.xlu0 %357
  %359 = vrot.lane.b32.xlu0 %v338, 96
  %v360 = vpop.permute.xlu0 %359
  %361 = vrot.lane.b32.xlu0 %v339, 96
  %v362 = vpop.permute.xlu0 %361
  %363 = vrot.lane.b32.xlu0 %v340, 96
  %v364 = vpop.permute.xlu0 %363
  %373 = vst.msk [vmem:[#allocation4] sm:$0xff] %vm284, %v350
  %374 = vst.msk [vmem:[#allocation4 + $0x8] sm:$0xff] %vm284, %v352
  %375 = vst.msk [vmem:[#allocation4 + $0x10] sm:$0xff] %vm284, %v354
  %376 = vst.msk [vmem:[#allocation4 + $0x18] sm:$0xff] %vm284, %v356
  %377 = vst.msk [vmem:[#allocation4 + $0x20] sm:$0xff] %vm284, %v358
  %378 = vst.msk [vmem:[#allocation4 + $0x28] sm:$0xff] %vm284, %v360
  %379 = vst.msk [vmem:[#allocation4 + $0x30] sm:$0xff] %vm284, %v362
  %380 = vst.msk [vmem:[#allocation4 + $0x38] sm:$0xff] %vm284, %v364
  %381 = vrot.lane.b32.xlu0 %v146, 64
  %v382 = vpop.permute.xlu0 %381
  %383 = vrot.lane.b32.xlu0 %v161, 64
  %v384 = vpop.permute.xlu0 %383
  %385 = vrot.lane.b32.xlu0 %v176, 64
  %v386 = vpop.permute.xlu0 %385
  %387 = vrot.lane.b32.xlu0 %v191, 64
  %v388 = vpop.permute.xlu0 %387
  %389 = vrot.lane.b32.xlu0 %v206, 64
  %v390 = vpop.permute.xlu0 %389
  %391 = vrot.lane.b32.xlu0 %v221, 64
  %v392 = vpop.permute.xlu0 %391
  %393 = vrot.lane.b32.xlu0 %v236, 64
  %v394 = vpop.permute.xlu0 %393
  %395 = vrot.lane.b32.xlu0 %v251, 64
  %v396 = vpop.permute.xlu0 %395
  %405 = vst.msk [vmem:[#allocation5] sm:$0xff] %vm284, %v382
  %406 = vst.msk [vmem:[#allocation5 + $0x8] sm:$0xff] %vm284, %v384
  %407 = vst.msk [vmem:[#allocation5 + $0x10] sm:$0xff] %vm284, %v386
  %408 = vst.msk [vmem:[#allocation5 + $0x18] sm:$0xff] %vm284, %v388
  %409 = vst.msk [vmem:[#allocation5 + $0x20] sm:$0xff] %vm284, %v390
  %410 = vst.msk [vmem:[#allocation5 + $0x28] sm:$0xff] %vm284, %v392
  %411 = vst.msk [vmem:[#allocation5 + $0x30] sm:$0xff] %vm284, %v394
  %412 = vst.msk [vmem:[#allocation5 + $0x38] sm:$0xff] %vm284, %v396
  %413 = vrot.lane.b32.xlu0 %v77, 96
  %v414 = vpop.permute.xlu0 %413
  %415 = vrot.lane.b32.xlu0 %v80, 96
  %v416 = vpop.permute.xlu0 %415
  %417 = vrot.lane.b32.xlu0 %v83, 96
  %v418 = vpop.permute.xlu0 %417
  %419 = vrot.lane.b32.xlu0 %v86, 96
  %v420 = vpop.permute.xlu0 %419
  %421 = vrot.lane.b32.xlu0 %v89, 96
  %v422 = vpop.permute.xlu0 %421
  %423 = vrot.lane.b32.xlu0 %v92, 96
  %v424 = vpop.permute.xlu0 %423
  %425 = vrot.lane.b32.xlu0 %v95, 96
  %v426 = vpop.permute.xlu0 %425
  %427 = vrot.lane.b32.xlu0 %v98, 96
  %v428 = vpop.permute.xlu0 %427
  %v437 = vmul.f32 %v293, %v414
  %v438 = vmul.f32 %v294, %v416
  %v439 = vmul.f32 %v295, %v418
  %v440 = vmul.f32 %v296, %v420
  %v441 = vmul.f32 %v297, %v422
  %v442 = vmul.f32 %v298, %v424
  %v443 = vmul.f32 %v299, %v426
  %v444 = vmul.f32 %v300, %v428
  %453 = vrot.lane.b32.xlu0 %v437, 64
  %v454 = vpop.permute.xlu0 %453
  %455 = vrot.lane.b32.xlu0 %v438, 64
  %v456 = vpop.permute.xlu0 %455
  %457 = vrot.lane.b32.xlu0 %v439, 64
  %v458 = vpop.permute.xlu0 %457
  %459 = vrot.lane.b32.xlu0 %v440, 64
  %v460 = vpop.permute.xlu0 %459
  %461 = vrot.lane.b32.xlu0 %v441, 64
  %v462 = vpop.permute.xlu0 %461
  %463 = vrot.lane.b32.xlu0 %v442, 64
  %v464 = vpop.permute.xlu0 %463
  %465 = vrot.lane.b32.xlu0 %v443, 64
  %v466 = vpop.permute.xlu0 %465
  %467 = vrot.lane.b32.xlu0 %v444, 64
  %v468 = vpop.permute.xlu0 %467
  %477 = vst.msk [vmem:[#allocation6] sm:$0xff] %vm284, %v454
  %478 = vst.msk [vmem:[#allocation6 + $0x8] sm:$0xff] %vm284, %v456
  %479 = vst.msk [vmem:[#allocation6 + $0x10] sm:$0xff] %vm284, %v458
  %480 = vst.msk [vmem:[#allocation6 + $0x18] sm:$0xff] %vm284, %v460
  %481 = vst.msk [vmem:[#allocation6 + $0x20] sm:$0xff] %vm284, %v462
  %482 = vst.msk [vmem:[#allocation6 + $0x28] sm:$0xff] %vm284, %v464
  %483 = vst.msk [vmem:[#allocation6 + $0x30] sm:$0xff] %vm284, %v466
  %484 = vst.msk [vmem:[#allocation6 + $0x38] sm:$0xff] %vm284, %v468
  %v485 = vld [vmem:[#allocation2] sm:$0xff]
  %v486 = vld [vmem:[#allocation3] sm:$0xff]
  %v487 = vmul.f32 %v486, %v485
  %v488 = vld [vmem:[#allocation4] sm:$0xff]
  %v489 = vadd.f32 %v487, %v488
  %v490 = vld [vmem:[#allocation5] sm:$0xff]
  %v491 = vtanh.pop %v489
  %v492 = vmul.f32 %v490, %v491
  %v493 = vld [vmem:[#allocation6] sm:$0xff]
  %v494 = vadd.f32 %v492, %v493
  %495 = vst.msk [vmem:[%s3] sm:$0xff] %vm284, %v494
  %s496 = scalar_lea.vmem [#allocation3], 8
  %v497 = vld [vmem:[%s496] sm:$0xff]
  %v498 = vmul.f32 %v497, %v489
  %s499 = scalar_lea.vmem [#allocation4], 8
  %v500 = vld [vmem:[%s499] sm:$0xff]
  %v501 = vadd.f32 %v498, %v500
  %s502 = scalar_lea.vmem [#allocation5], 8
  %v503 = vld [vmem:[%s502] sm:$0xff]
  %v504 = vtanh.pop %v501
  %v505 = vmul.f32 %v503, %v504
  %s506 = scalar_lea.vmem [#allocation6], 8
  %v507 = vld [vmem:[%s506] sm:$0xff]
  %v508 = vadd.f32 %v505, %v507
  %s509 = scalar_lea.vmem %s3, 8
  %510 = vst.msk [vmem:[%s509] sm:$0xff] %vm284, %v508
  %s511 = scalar_lea.vmem [#allocation3], 16
  %v512 = vld [vmem:[%s511] sm:$0xff]
  %v513 = vmul.f32 %v512, %v501
  %s514 = scalar_lea.vmem [#allocation4], 16
  %v515 = vld [vmem:[%s514] sm:$0xff]
  %v516 = vadd.f32 %v513, %v515
  %s517 = scalar_lea.vmem [#allocation5], 16
  %v518 = vld [vmem:[%s517] sm:$0xff]
  %v519 = vtanh.pop %v516
  %v520 = vmul.f32 %v518, %v519
  %s521 = scalar_lea.vmem [#allocation6], 16
  %v522 = vld [vmem:[%s521] sm:$0xff]
  %v523 = vadd.f32 %v520, %v522
  %s524 = scalar_lea.vmem %s3, 16
  %525 = vst.msk [vmem:[%s524] sm:$0xff] %vm284, %v523
  %s526 = scalar_lea.vmem [#allocation3], 24
  %v527 = vld [vmem:[%s526] sm:$0xff]
  %v528 = vmul.f32 %v527, %v516
  %s529 = scalar_lea.vmem [#allocation4], 24
  %v530 = vld [vmem:[%s529] sm:$0xff]
  %v531 = vadd.f32 %v528, %v530
  %s532 = scalar_lea.vmem [#allocation5], 24
  %v533 = vld [vmem:[%s532] sm:$0xff]
  %v534 = vtanh.pop %v531
  %v535 = vmul.f32 %v533, %v534
  %s536 = scalar_lea.vmem [#allocation6], 24
  %v537 = vld [vmem:[%s536] sm:$0xff]
  %v538 = vadd.f32 %v535, %v537
  %s539 = scalar_lea.vmem %s3, 24
  %540 = vst.msk [vmem:[%s539] sm:$0xff] %vm284, %v538
  %s541 = scalar_lea.vmem [#allocation3], 32
  %v542 = vld [vmem:[%s541] sm:$0xff]
  %v543 = vmul.f32 %v542, %v531
  %s544 = scalar_lea.vmem [#allocation4], 32
  %v545 = vld [vmem:[%s544] sm:$0xff]
  %v546 = vadd.f32 %v543, %v545
  %s547 = scalar_lea.vmem [#allocation5], 32
  %v548 = vld [vmem:[%s547] sm:$0xff]
  %v549 = vtanh.pop %v546
  %v550 = vmul.f32 %v548, %v549
  %s551 = scalar_lea.vmem [#allocation6], 32
  %v552 = vld [vmem:[%s551] sm:$0xff]
  %v553 = vadd.f32 %v550, %v552
  %s554 = scalar_lea.vmem %s3, 32
  %555 = vst.msk [vmem:[%s554] sm:$0xff] %vm284, %v553
  %s556 = scalar_lea.vmem [#allocation3], 40
  %v557 = vld [vmem:[%s556] sm:$0xff]
  %v558 = vmul.f32 %v557, %v546
  %s559 = scalar_lea.vmem [#allocation4], 40
  %v560 = vld [vmem:[%s559] sm:$0xff]
  %v561 = vadd.f32 %v558, %v560
  %s562 = scalar_lea.vmem [#allocation5], 40
  %v563 = vld [vmem:[%s562] sm:$0xff]
  %v564 = vtanh.pop %v561
  %v565 = vmul.f32 %v563, %v564
  %s566 = scalar_lea.vmem [#allocation6], 40
  %v567 = vld [vmem:[%s566] sm:$0xff]
  %v568 = vadd.f32 %v565, %v567
  %s569 = scalar_lea.vmem %s3, 40
  %570 = vst.msk [vmem:[%s569] sm:$0xff] %vm284, %v568
  %s571 = scalar_lea.vmem [#allocation3], 48
  %v572 = vld [vmem:[%s571] sm:$0xff]
  %v573 = vmul.f32 %v572, %v561
  %s574 = scalar_lea.vmem [#allocation4], 48
  %v575 = vld [vmem:[%s574] sm:$0xff]
  %v576 = vadd.f32 %v573, %v575
  %s577 = scalar_lea.vmem [#allocation5], 48
  %v578 = vld [vmem:[%s577] sm:$0xff]
  %v579 = vtanh.pop %v576
  %v580 = vmul.f32 %v578, %v579
  %s581 = scalar_lea.vmem [#allocation6], 48
  %v582 = vld [vmem:[%s581] sm:$0xff]
  %v583 = vadd.f32 %v580, %v582
  %s584 = scalar_lea.vmem %s3, 48
  %585 = vst.msk [vmem:[%s584] sm:$0xff] %vm284, %v583
  %s586 = scalar_lea.vmem [#allocation3], 56
  %v587 = vld [vmem:[%s586] sm:$0xff]
  %v588 = vmul.f32 %v587, %v576
  %s589 = scalar_lea.vmem [#allocation4], 56
  %v590 = vld [vmem:[%s589] sm:$0xff]
  %v591 = vadd.f32 %v588, %v590
  %s592 = scalar_lea.vmem [#allocation5], 56
  %v593 = vld [vmem:[%s592] sm:$0xff]
  %v594 = vtanh.pop %v591
  %v595 = vmul.f32 %v593, %v594
  %s596 = scalar_lea.vmem [#allocation6], 56
  %v597 = vld [vmem:[%s596] sm:$0xff]
  %v598 = vadd.f32 %v595, %v597
  %s599 = scalar_lea.vmem %s3, 56
  %600 = vst.msk [vmem:[%s599] sm:$0xff] %vm284, %v598
  %601 = vst.msk [vmem:[#allocation2] sm:$0xff] %vm284, %v591
  // Predicated region
  $region18: #{song2hum_forward.2} parent=0 // pred_check
    _
  $region19: #{song2hum_forward.2} parent=0 // pred_check_branch
    %603 = sbr.rel (0) target = $region21
  $region20: #{song2hum_forward.2} parent=0 // pred_region
    _
  $region21: #{song2hum_forward.2} parent=0 // pred_fallthru
    _
  // Predicated region
  $region22: #{song2hum_forward.2} parent=0 // pred_check
    _
  $region23: #{song2hum_forward.2} parent=0 // pred_check_branch
    %605 = sbr.rel (0) target = $region25
  $region24: #{song2hum_forward.2} parent=0 // pred_region
    _
  $region25: #{song2hum_forward.2} parent=0 // pred_fallthru
    _

</llo_original>
